<compile_context>
chip_gen: v5e
topology: v5e:2x2
jax: 0.10.0
libtpu: 0.0.40
codegen_flags: <defaults>
</compile_context>

<pallas_src>
import functools

import jax
import jax.numpy as jnp
from jax.experimental import pallas as pl
from jax.experimental.pallas import tpu as pltpu


H = 512
OUT = 10
OUT_PAD = 128    # lane-dense last layer / output


def _round_up(x, m):
    return ((x + m - 1) // m) * m


def mlp_kernel(x_ref, w1_ref, b1_ref, w2_ref, b2_ref, w3_ref, b3_ref, o_ref):
    # x_ref:  (TM, 784) f32        w1_ref: (784, 512) bf16   b1_ref: (1, 512) f32
    # w2_ref: (512, 512) bf16      b2_ref: (1, 512)  f32
    # w3_ref: (512, 128) bf16      b3_ref: (1, 128)  f32
    # o_ref:  (TM, 128)  bf16
    x = x_ref[...].astype(jnp.bfloat16)          # cast in-kernel (no extra HBM pass)

    h1 = jnp.dot(x, w1_ref[...], preferred_element_type=jnp.float32) + b1_ref[...]
    h1 = jnp.maximum(h1, 0.0).astype(jnp.bfloat16)

    h2 = jnp.dot(h1, w2_ref[...], preferred_element_type=jnp.float32) + b2_ref[...]
    h2 = jnp.maximum(h2, 0.0).astype(jnp.bfloat16)

    h3 = jnp.dot(h2, w3_ref[...], preferred_element_type=jnp.float32) + b3_ref[...]
    h3 = jnp.maximum(h3, 0.0)

    o_ref[...] = h3.astype(o_ref.dtype)


@functools.partial(jax.jit, static_argnames=("tm",))
def neural_network_forward(x_nchw, params, *, tm=None):
    """x_nchw: (B, 1, 28, 28) float32. Returns (B, 10) float32 logits."""
    w1, b1, w2, b2, w3, b3 = params
    B = x_nchw.shape[0]

    x_flat = x_nchw.reshape(B, -1)               # (B, 784) f32 — view, no HBM copy
    K = x_flat.shape[1]

    # Tile-size heuristic: one tile for small B; >= 2 grid steps (both v7x TCs)
    # for larger B; cap at 512 rows to stay comfortably inside scoped VMEM.
    if tm is None:
        if B <= 256:
            tm = max(16, _round_up(B, 16))
        else:
            tm = min(512, _round_up(-(-B // 2), 16))
    grid = (pl.cdiv(B, tm),)

    # One-time, tiny weight-side prep (weights are ~1 MiB total vs per-batch x).
    w1_b = w1.astype(jnp.bfloat16)                                    # (784, 512)
    w2_b = w2.astype(jnp.bfloat16)                                    # (512, 512)
    w3_p = jnp.zeros((H, OUT_PAD), jnp.bfloat16).at[:, :OUT].set(w3.astype(jnp.bfloat16))
    b1_f = b1.astype(jnp.float32)                                     # (1, 512)
    b2_f = b2.astype(jnp.float32)                                     # (1, 512)
    b3_p = jnp.zeros((1, OUT_PAD), jnp.float32).at[:, :OUT].set(b3.astype(jnp.float32))

    const = lambda shape: pl.BlockSpec(shape, lambda i: (0, 0))

    out_bf16 = pl.pallas_call(
        mlp_kernel,
        out_shape=jax.ShapeDtypeStruct((B, OUT_PAD), jnp.bfloat16),
        grid=grid,
        in_specs=[
            pl.BlockSpec((tm, K), lambda i: (i, 0)),   # x tiles, double-buffered
            const((K, H)), const((1, H)),              # layer 1 (VMEM-resident)
            const((H, H)), const((1, H)),              # layer 2
            const((H, OUT_PAD)), const((1, OUT_PAD)),  # layer 3 (lane-dense pad)
        ],
        out_specs=pl.BlockSpec((tm, OUT_PAD), lambda i: (i, 0)),
        compiler_params=pltpu.CompilerParams(
            dimension_semantics=("parallel",),
        ),
    )(x_flat, w1_b, b1_f, w2_b, b2_f, w3_p, b3_p)

    return out_bf16[:, :OUT].astype(jnp.float32)


def init_params(key):
    """PyTorch-style Linear init; weights stored pre-transposed (in, out)."""
    k1, k2, k3, k4, k5, k6 = jax.random.split(key, 6)

    def linear(kw, kb, fan_in, fan_out):
        bound = 1.0 / jnp.sqrt(fan_in)
        w = jax.random.uniform(kw, (fan_in, fan_out), jnp.float32, -bound, bound)
        b = jax.random.uniform(kb, (1, fan_out), jnp.float32, -bound, bound)
        return w, b

    w1, b1 = linear(k1, k2, 28 * 28, H)
    w2, b2 = linear(k3, k4, H, H)
    w3, b3 = linear(k5, k6, H, OUT)
    return (w1, b1, w2, b2, w3, b3)


def reference_forward_bf16(x_nchw, params):
    """Pure-JAX reference mirroring the kernel's bf16-operand / f32-accum math."""
    w1, b1, w2, b2, w3, b3 = params
    x = x_nchw.reshape(x_nchw.shape[0], -1).astype(jnp.bfloat16)
    h = jnp.dot(x, w1.astype(jnp.bfloat16), preferred_element_type=jnp.float32) + b1
    h = jnp.maximum(h, 0.0).astype(jnp.bfloat16)
    h = jnp.dot(h, w2.astype(jnp.bfloat16), preferred_element_type=jnp.float32) + b2
    h = jnp.maximum(h, 0.0).astype(jnp.bfloat16)
    h = jnp.dot(h, w3.astype(jnp.bfloat16), preferred_element_type=jnp.float32) + b3
    h = jnp.maximum(h, 0.0)
    return h.astype(jnp.bfloat16).astype(jnp.float32)


def reference_forward_f32(x_nchw, params):
    """Full-precision f32 reference (true PyTorch forward); looser tolerance."""
    w1, b1, w2, b2, w3, b3 = params
    x = x_nchw.reshape(x_nchw.shape[0], -1)
    h = jnp.maximum(jnp.dot(x, w1) + b1, 0.0)
    h = jnp.maximum(jnp.dot(h, w2) + b2, 0.0)
    h = jnp.maximum(jnp.dot(h, w3) + b3, 0.0)
    return h


if __name__ == "__main__":
    key = jax.random.PRNGKey(0)
    kx, kp = jax.random.split(key)

    B = 2
    x = jax.random.normal(kx, (B, 1, 28, 28), jnp.float32)  # NCHW, like PyTorch
    params = init_params(kp)

    out = neural_network_forward(x, params)
    out = jax.block_until_ready(out)
    assert out.shape == (B, 10)

    # Exact-path check (same bf16-operand / f32-accum math as the kernel).
    ref_bf16 = reference_forward_bf16(x, params)
    assert jnp.allclose(out, ref_bf16, atol=2e-2, rtol=2e-2), "mismatch vs bf16 reference"

    # Fidelity check vs true f32 forward (documented loose tolerance for bf16 error).
    ref_f32 = reference_forward_f32(x, params)
    assert jnp.allclose(out, ref_f32, atol=1e-1, rtol=1e-1), "mismatch vs f32 reference"

    print("KERNEL_OK")
</pallas_src>

<mosaic_0001>
module attributes {stable_mosaic.version = 11 : i64} {
  func.func @mlp_kernel(%arg0: i32, %arg1: memref<16x784xf32, #tpu.memory_space<vmem>>, %arg2: memref<784x512xbf16, #tpu.memory_space<vmem>>, %arg3: memref<1x512xf32, #tpu.memory_space<vmem>>, %arg4: memref<512x512xbf16, #tpu.memory_space<vmem>>, %arg5: memref<1x512xf32, #tpu.memory_space<vmem>>, %arg6: memref<512x128xbf16, #tpu.memory_space<vmem>>, %arg7: memref<1x128xf32, #tpu.memory_space<vmem>>, %arg8: memref<16x128xbf16, #tpu.memory_space<vmem>>) attributes {dimension_semantics = [#tpu.dimension_semantics<parallel>], iteration_bounds = array<i64: 1>, scalar_prefetch = 0 : i64, scratch_operands = 0 : i64, tpu.core_type = #tpu.core_type<tc>, window_params = [{transform_indices = @transform_0, window_bounds = array<i64: 16, 784>}, {pipeline_mode = #tpu.pipeline_mode<synchronous>, transform_indices = @transform_1, window_bounds = array<i64: 784, 512>}, {pipeline_mode = #tpu.pipeline_mode<synchronous>, transform_indices = @transform_2, window_bounds = array<i64: 1, 512>}, {pipeline_mode = #tpu.pipeline_mode<synchronous>, transform_indices = @transform_3, window_bounds = array<i64: 512, 512>}, {pipeline_mode = #tpu.pipeline_mode<synchronous>, transform_indices = @transform_4, window_bounds = array<i64: 1, 512>}, {pipeline_mode = #tpu.pipeline_mode<synchronous>, transform_indices = @transform_5, window_bounds = array<i64: 512, 128>}, {pipeline_mode = #tpu.pipeline_mode<synchronous>, transform_indices = @transform_6, window_bounds = array<i64: 1, 128>}, {transform_indices = @transform_7, window_bounds = array<i64: 16, 128>}]} {
    %c0 = arith.constant 0 : index
    %c0_0 = arith.constant 0 : index
    %0 = vector.load %arg1[%c0, %c0_0] : memref<16x784xf32, #tpu.memory_space<vmem>>, vector<16x784xf32>
    %1 = arith.truncf %0 : vector<16x784xf32> to vector<16x784xbf16>
    %c0_1 = arith.constant 0 : index
    %c0_2 = arith.constant 0 : index
    %2 = vector.load %arg2[%c0_1, %c0_2] : memref<784x512xbf16, #tpu.memory_space<vmem>>, vector<784x512xbf16>
    %cst = arith.constant dense<0.000000e+00> : vector<16x512xf32>
    %3 = tpu.matmul %1, %2, %cst {dimension_numbers = #tpu.dot_dimension_numbers<[1], [0], [0], [1], [0, 0, 1, 1], [], []>} : vector<16x784xbf16>, vector<784x512xbf16>, vector<16x512xf32> -> vector<16x512xf32>
    %c0_3 = arith.constant 0 : index
    %c0_4 = arith.constant 0 : index
    %4 = vector.load %arg3[%c0_3, %c0_4] : memref<1x512xf32, #tpu.memory_space<vmem>>, vector<1x512xf32>
    %5 = vector.broadcast %4 : vector<1x512xf32> to vector<16x512xf32>
    %6 = arith.addf %3, %5 : vector<16x512xf32>
    %cst_5 = arith.constant 0.000000e+00 : f32
    %7 = vector.broadcast %cst_5 : f32 to vector<16x512xf32>
    %8 = arith.maximumf %6, %7 : vector<16x512xf32>
    %9 = arith.truncf %8 : vector<16x512xf32> to vector<16x512xbf16>
    %c0_6 = arith.constant 0 : index
    %c0_7 = arith.constant 0 : index
    %10 = vector.load %arg4[%c0_6, %c0_7] : memref<512x512xbf16, #tpu.memory_space<vmem>>, vector<512x512xbf16>
    %cst_8 = arith.constant dense<0.000000e+00> : vector<16x512xf32>
    %11 = tpu.matmul %9, %10, %cst_8 {dimension_numbers = #tpu.dot_dimension_numbers<[1], [0], [0], [1], [0, 0, 1, 1], [], []>} : vector<16x512xbf16>, vector<512x512xbf16>, vector<16x512xf32> -> vector<16x512xf32>
    %c0_9 = arith.constant 0 : index
    %c0_10 = arith.constant 0 : index
    %12 = vector.load %arg5[%c0_9, %c0_10] : memref<1x512xf32, #tpu.memory_space<vmem>>, vector<1x512xf32>
    %13 = vector.broadcast %12 : vector<1x512xf32> to vector<16x512xf32>
    %14 = arith.addf %11, %13 : vector<16x512xf32>
    %cst_11 = arith.constant 0.000000e+00 : f32
    %15 = vector.broadcast %cst_11 : f32 to vector<16x512xf32>
    %16 = arith.maximumf %14, %15 : vector<16x512xf32>
    %17 = arith.truncf %16 : vector<16x512xf32> to vector<16x512xbf16>
    %c0_12 = arith.constant 0 : index
    %c0_13 = arith.constant 0 : index
    %18 = vector.load %arg6[%c0_12, %c0_13] : memref<512x128xbf16, #tpu.memory_space<vmem>>, vector<512x128xbf16>
    %cst_14 = arith.constant dense<0.000000e+00> : vector<16x128xf32>
    %19 = tpu.matmul %17, %18, %cst_14 {dimension_numbers = #tpu.dot_dimension_numbers<[1], [0], [0], [1], [0, 0, 1, 1], [], []>} : vector<16x512xbf16>, vector<512x128xbf16>, vector<16x128xf32> -> vector<16x128xf32>
    %c0_15 = arith.constant 0 : index
    %c0_16 = arith.constant 0 : index
    %20 = vector.load %arg7[%c0_15, %c0_16] : memref<1x128xf32, #tpu.memory_space<vmem>>, vector<1x128xf32>
    %21 = vector.broadcast %20 : vector<1x128xf32> to vector<16x128xf32>
    %22 = arith.addf %19, %21 : vector<16x128xf32>
    %cst_17 = arith.constant 0.000000e+00 : f32
    %23 = vector.broadcast %cst_17 : f32 to vector<16x128xf32>
    %24 = arith.maximumf %22, %23 : vector<16x128xf32>
    %25 = arith.truncf %24 : vector<16x128xf32> to vector<16x128xbf16>
    %c0_18 = arith.constant 0 : index
    %c0_19 = arith.constant 0 : index
    %26 = vector.load %arg8[%c0_18, %c0_19] : memref<16x128xbf16, #tpu.memory_space<vmem>>, vector<16x128xbf16>
    tpu.vector_store %arg8[%c0_18, %c0_19], %25 {strides = array<i32>} : memref<16x128xbf16, #tpu.memory_space<vmem>>, vector<16x128xbf16>,
    return
  }
  func.func @transform_0(%arg0: i32) -> (i32, i32) {
    %c0_i32 = arith.constant 0 : i32
    %c0_i32_0 = arith.constant 0 : i32
    return %arg0, %c0_i32 : i32, i32
  }
  func.func @transform_1(%arg0: i32) -> (i32, i32) {
    %c0_i32 = arith.constant 0 : i32
    %c0_i32_0 = arith.constant 0 : i32
    %c0_i32_1 = arith.constant 0 : i32
    return %c0_i32, %c0_i32_0 : i32, i32
  }
  func.func @transform_2(%arg0: i32) -> (i32, i32) {
    %c0_i32 = arith.constant 0 : i32
    %c0_i32_0 = arith.constant 0 : i32
    %c0_i32_1 = arith.constant 0 : i32
    return %c0_i32, %c0_i32_0 : i32, i32
  }
  func.func @transform_3(%arg0: i32) -> (i32, i32) {
    %c0_i32 = arith.constant 0 : i32
    %c0_i32_0 = arith.constant 0 : i32
    %c0_i32_1 = arith.constant 0 : i32
    return %c0_i32, %c0_i32_0 : i32, i32
  }
  func.func @transform_4(%arg0: i32) -> (i32, i32) {
    %c0_i32 = arith.constant 0 : i32
    %c0_i32_0 = arith.constant 0 : i32
    %c0_i32_1 = arith.constant 0 : i32
    return %c0_i32, %c0_i32_0 : i32, i32
  }
  func.func @transform_5(%arg0: i32) -> (i32, i32) {
    %c0_i32 = arith.constant 0 : i32
    %c0_i32_0 = arith.constant 0 : i32
    %c0_i32_1 = arith.constant 0 : i32
    return %c0_i32, %c0_i32_0 : i32, i32
  }
  func.func @transform_6(%arg0: i32) -> (i32, i32) {
    %c0_i32 = arith.constant 0 : i32
    %c0_i32_0 = arith.constant 0 : i32
    %c0_i32_1 = arith.constant 0 : i32
    return %c0_i32, %c0_i32_0 : i32, i32
  }
  func.func @transform_7(%arg0: i32) -> (i32, i32) {
    %c0_i32 = arith.constant 0 : i32
    %c0_i32_0 = arith.constant 0 : i32
    return %arg0, %c0_i32 : i32, i32
  }
}

</mosaic_0001>

<llo_original>
// kernel: neural_network_forward.1
$region0: #{neural_network_forward.1}
  #allocation0 [shape = 'u32[]', space=smem, size = 0x4, offset = 0x4, fixed_abs, tag = 'smem constant byte address 0x4 - core index']
  #allocation1 [shape = 'u32[72,128]{1,0:T(1,128)}', space=vmem, size = 0x9000, scoped, tag = 'internal scratch']
  %s0 = inlined_call_operand.vmem [shape: f32[2,784], index: 0, kind: input, shape index: {}]
  %s1 = inlined_call_operand.vmem [shape: bf16[784,512], index: 1, kind: input, shape index: {}]
  %s2 = inlined_call_operand.vmem [shape: f32[1,512], index: 2, kind: input, shape index: {}]
  %s3 = inlined_call_operand.vmem [shape: bf16[512,512], index: 3, kind: input, shape index: {}]
  %s4 = inlined_call_operand.vmem [shape: f32[1,512], index: 4, kind: input, shape index: {}]
  %s5 = inlined_call_operand.vmem [shape: bf16[512,128], index: 5, kind: input, shape index: {}]
  %s6 = inlined_call_operand.vmem [shape: f32[1,128], index: 6, kind: input, shape index: {}]
  %s7 = inlined_call_operand.vmem [shape: bf16[2,128], index: 7, kind: output, shape index: {}]
  %s8 = sld [smem:[#allocation0]]
  $region68: #{neural_network_forward.1} parent=0
    _
  %s10 = ssub.s32 1, %s8
  %s11 = scalar_select 0, %s10, %s8
  $region1: #{neural_network_forward.1} parent=0
    #allocation2 [shape = 'u8[4096]{0}', space=vmem, size = 0x1000, scoped, tag = 'output window, operand 0, single buffered']
    // Predicated region
    $region2: #{neural_network_forward.1} parent=1 // pred_check
      _
    $region3: #{neural_network_forward.1} parent=1 // pred_check_branch
      %13 = sbr.rel (0) target = $region5
    $region4: #{neural_network_forward.1} parent=1 // pred_region
      _
    $region5: #{neural_network_forward.1} parent=1 // pred_fallthru
      _
    // Predicated region
    $region6: #{neural_network_forward.1} parent=1 // pred_check
      _
    $region7: #{neural_network_forward.1} parent=1 // pred_check_branch
      %15 = sbr.rel (0) target = $region9
    $region8: #{neural_network_forward.1} parent=1 // pred_region
      _
    $region9: #{neural_network_forward.1} parent=1 // pred_fallthru
      _
    // Predicated region
    $region10: #{neural_network_forward.1} parent=1 // pred_check
      _
    $region11: #{neural_network_forward.1} parent=1 // pred_check_branch
      %17 = sbr.rel (0) target = $region13
    $region12: #{neural_network_forward.1} parent=1 // pred_region
      _
    $region13: #{neural_network_forward.1} parent=1 // pred_fallthru
      _
    // Predicated region
    $region14: #{neural_network_forward.1} parent=1 // pred_check
      _
    $region15: #{neural_network_forward.1} parent=1 // pred_check_branch
      %19 = sbr.rel (0) target = $region17
    $region16: #{neural_network_forward.1} parent=1 // pred_region
      _
    $region17: #{neural_network_forward.1} parent=1 // pred_fallthru
      _
    // Predicated region
    $region18: #{neural_network_forward.1} parent=1 // pred_check
      _
    $region19: #{neural_network_forward.1} parent=1 // pred_check_branch
      %21 = sbr.rel (0) target = $region21
    $region20: #{neural_network_forward.1} parent=1 // pred_region
      _
    $region21: #{neural_network_forward.1} parent=1 // pred_fallthru
      _
    // Predicated region
    $region22: #{neural_network_forward.1} parent=1 // pred_check
      _
    $region23: #{neural_network_forward.1} parent=1 // pred_check_branch
      %23 = sbr.rel (0) target = $region25
    $region24: #{neural_network_forward.1} parent=1 // pred_region
      _
    $region25: #{neural_network_forward.1} parent=1 // pred_fallthru
      _
    // Predicated region
    $region26: #{neural_network_forward.1} parent=1 // pred_check
      _
    $region27: #{neural_network_forward.1} parent=1 // pred_check_branch
      %25 = sbr.rel (0) target = $region29
    $region28: #{neural_network_forward.1} parent=1 // pred_region
      _
    $region29: #{neural_network_forward.1} parent=1 // pred_fallthru
      _
    %v27 = vld [vmem:[%s0] sm:$0xff]
    %v28 = vld [vmem:[%s0 + $0x8] sm:$0x3f]
    %v29 = vld [vmem:[%s0 + $0xe] sm:$0xff]
    %v30 = vld [vmem:[%s0 + $0x16] sm:$0x3f]
    %v31 = vld [vmem:[%s0 + $0x1c] sm:$0xff]
    %v32 = vld [vmem:[%s0 + $0x24] sm:$0x3f]
    %v33 = vld [vmem:[%s0 + $0x2a] sm:$0xff]
    %v34 = vld [vmem:[%s0 + $0x32] sm:$0x3f]
    %v35 = vld [vmem:[%s0 + $0x38] sm:$0xff]
    %v36 = vld [vmem:[%s0 + $0x40] sm:$0x3f]
    %v37 = vld [vmem:[%s0 + $0x46] sm:$0xff]
    %v38 = vld [vmem:[%s0 + $0x4e] sm:$0x3f]
    %v39 = vld [vmem:[%s0 + $0x54] sm:$0xff]
    %v40 = vld [vmem:[%s0 + $0x5c] sm:$0x3f]
    %v41 = vld [vmem:[%s0 + $0x62] sm:$0xff]
    %v42 = vld [vmem:[%s0 + $0x6a] sm:$0x3f]
    %59 = vst [vmem:[#allocation1] ss:$4 sm:$0xff] %v27
    %s60 = scalar_lea.vmem [#allocation1], 1
    %61 = vst [vmem:[%s60] ss:$4 sm:$0xff] %v29
    %s62 = scalar_lea.vmem [#allocation1], 2
    %63 = vst [vmem:[%s62] ss:$4 sm:$0xff] %v31
    %s64 = scalar_lea.vmem [#allocation1], 3
    %65 = vst [vmem:[%s64] ss:$4 sm:$0xff] %v33
    %s66 = scalar_lea.vmem [#allocation1], 32
    %67 = vst [vmem:[%s66] ss:$4 sm:$0xff] %v28
    %s68 = scalar_lea.vmem [#allocation1], 33
    %69 = vst [vmem:[%s68] ss:$4 sm:$0xff] %v30
    %s70 = scalar_lea.vmem [#allocation1], 34
    %71 = vst [vmem:[%s70] ss:$4 sm:$0xff] %v32
    %s72 = scalar_lea.vmem [#allocation1], 35
    %73 = vst [vmem:[%s72] ss:$4 sm:$0xff] %v34
    %v74 = vld.sshfl [vmem:[#allocation1] sm:$0xff pattern:$0x73625140]
    %v75 = vld.sshfl [vmem:[#allocation1 + $0x8] sm:$0xff pattern:$0x73625140]
    %v76 = vld.sshfl [vmem:[#allocation1 + $0x10] sm:$0xff pattern:$0x73625140]
    %v77 = vld.sshfl [vmem:[#allocation1 + $0x18] sm:$0xff pattern:$0x73625140]
    %v78 = vld.sshfl [vmem:[#allocation1 + $0x20] sm:$0xff pattern:$0x73625140]
    %v79 = vld.sshfl [vmem:[#allocation1 + $0x28] sm:$0xff pattern:$0x73625140]
    %v80 = vld.sshfl [vmem:[#allocation1 + $0x30] sm:$0xff pattern:$0x73625140]
    %81 = vst [vmem:[#allocation1] ss:$4 sm:$0xff] %v35
    %82 = vst [vmem:[%s60] ss:$4 sm:$0xff] %v37
    %83 = vst [vmem:[%s62] ss:$4 sm:$0xff] %v39
    %84 = vst [vmem:[%s64] ss:$4 sm:$0xff] %v41
    %85 = vst [vmem:[%s66] ss:$4 sm:$0xff] %v36
    %86 = vst [vmem:[%s68] ss:$4 sm:$0xff] %v38
    %87 = vst [vmem:[%s70] ss:$4 sm:$0xff] %v40
    %88 = vst [vmem:[%s72] ss:$4 sm:$0xff] %v42
    %v89 = vld.sshfl [vmem:[#allocation1] sm:$0xff pattern:$0x73625140]
    %v90 = vld.sshfl [vmem:[#allocation1 + $0x8] sm:$0xff pattern:$0x73625140]
    %v91 = vld.sshfl [vmem:[#allocation1 + $0x10] sm:$0xff pattern:$0x73625140]
    %v92 = vld.sshfl [vmem:[#allocation1 + $0x18] sm:$0xff pattern:$0x73625140]
    %v93 = vld.sshfl [vmem:[#allocation1 + $0x20] sm:$0xff pattern:$0x73625140]
    %v94 = vld.sshfl [vmem:[#allocation1 + $0x28] sm:$0xff pattern:$0x73625140]
    %v95 = vld.sshfl [vmem:[#allocation1 + $0x30] sm:$0xff pattern:$0x73625140]
    %v110 = vpack.c.bf16 %v89, %v74
    %v111 = vpack.c.bf16 %v90, %v75
    %v112 = vpack.c.bf16 %v91, %v76
    %v113 = vpack.c.bf16 %v92, %v77
    %v114 = vpack.c.bf16 %v93, %v78
    %v115 = vpack.c.bf16 %v94, %v79
    %v116 = vpack.c.bf16 %v95, %v80
    %v117 = vld [vmem:[%s1] sm:$0xff]
    %v118 = vld [vmem:[%s1 + $0x8] sm:$0xff]
    %v119 = vld [vmem:[%s1 + $0x10] sm:$0xff]
    %v120 = vld [vmem:[%s1 + $0x18] sm:$0xff]
    %v121 = vld [vmem:[%s1 + $0x20] sm:$0xff]
    %v122 = vld [vmem:[%s1 + $0x28] sm:$0xff]
    %v123 = vld [vmem:[%s1 + $0x30] sm:$0xff]
    %v124 = vld [vmem:[%s1 + $0x38] sm:$0xff]
    %v125 = vld [vmem:[%s1 + $0x40] sm:$0xff]
    %v126 = vld [vmem:[%s1 + $0x48] sm:$0xff]
    %v127 = vld [vmem:[%s1 + $0x50] sm:$0xff]
    %v128 = vld [vmem:[%s1 + $0x58] sm:$0xff]
    %v129 = vld [vmem:[%s1 + $0x60] sm:$0xff]
    %v130 = vld [vmem:[%s1 + $0x68] sm:$0xff]
    %v131 = vld [vmem:[%s1 + $0x70] sm:$0xff]
    %v132 = vld [vmem:[%s1 + $0x78] sm:$0xff]
    %v133 = vld [vmem:[%s1 + $0x80] sm:$0xff]
    %v134 = vld [vmem:[%s1 + $0x88] sm:$0xff]
    %v135 = vld [vmem:[%s1 + $0x90] sm:$0xff]
    %v136 = vld [vmem:[%s1 + $0x98] sm:$0xff]
    %v137 = vld [vmem:[%s1 + $0xa0] sm:$0xff]
    %v138 = vld [vmem:[%s1 + $0xa8] sm:$0xff]
    %v139 = vld [vmem:[%s1 + $0xb0] sm:$0xff]
    %v140 = vld [vmem:[%s1 + $0xb8] sm:$0xff]
    %v141 = vld [vmem:[%s1 + $0xc0] sm:$0xff]
    %v142 = vld [vmem:[%s1 + $0xc8] sm:$0xff]
    %v143 = vld [vmem:[%s1 + $0xd0] sm:$0xff]
    %v144 = vld [vmem:[%s1 + $0xd8] sm:$0xff]
    %v145 = vld [vmem:[%s1 + $0xe0] sm:$0xff]
    %v146 = vld [vmem:[%s1 + $0xe8] sm:$0xff]
    %v147 = vld [vmem:[%s1 + $0xf0] sm:$0xff]
    %v148 = vld [vmem:[%s1 + $0xf8] sm:$0xff]
    %v149 = vld [vmem:[%s1 + $0x100] sm:$0xff]
    %v150 = vld [vmem:[%s1 + $0x108] sm:$0xff]
    %v151 = vld [vmem:[%s1 + $0x110] sm:$0xff]
    %v152 = vld [vmem:[%s1 + $0x118] sm:$0xff]
    %v153 = vld [vmem:[%s1 + $0x120] sm:$0xff]
    %v154 = vld [vmem:[%s1 + $0x128] sm:$0xff]
    %v155 = vld [vmem:[%s1 + $0x130] sm:$0xff]
    %v156 = vld [vmem:[%s1 + $0x138] sm:$0xff]
    %v157 = vld [vmem:[%s1 + $0x140] sm:$0xff]
    %v158 = vld [vmem:[%s1 + $0x148] sm:$0xff]
    %v159 = vld [vmem:[%s1 + $0x150] sm:$0xff]
    %v160 = vld [vmem:[%s1 + $0x158] sm:$0xff]
    %v161 = vld [vmem:[%s1 + $0x160] sm:$0xff]
    %v162 = vld [vmem:[%s1 + $0x168] sm:$0xff]
    %v163 = vld [vmem:[%s1 + $0x170] sm:$0xff]
    %v164 = vld [vmem:[%s1 + $0x178] sm:$0xff]
    %v165 = vld [vmem:[%s1 + $0x180] sm:$0xff]
    %v166 = vld [vmem:[%s1 + $0x188] sm:$0xff]
    %v167 = vld [vmem:[%s1 + $0x190] sm:$0xff]
    %v168 = vld [vmem:[%s1 + $0x198] sm:$0xff]
    %v169 = vld [vmem:[%s1 + $0x1a0] sm:$0xff]
    %v170 = vld [vmem:[%s1 + $0x1a8] sm:$0xff]
    %v171 = vld [vmem:[%s1 + $0x1b0] sm:$0xff]
    %v172 = vld [vmem:[%s1 + $0x1b8] sm:$0xff]
    %v173 = vld [vmem:[%s1 + $0x1c0] sm:$0xff]
    %v174 = vld [vmem:[%s1 + $0x1c8] sm:$0xff]
    %v175 = vld [vmem:[%s1 + $0x1d0] sm:$0xff]
    %v176 = vld [vmem:[%s1 + $0x1d8] sm:$0xff]
    %v177 = vld [vmem:[%s1 + $0x1e0] sm:$0xff]
    %v178 = vld [vmem:[%s1 + $0x1e8] sm:$0xff]
    %v179 = vld [vmem:[%s1 + $0x1f0] sm:$0xff]
    %v180 = vld [vmem:[%s1 + $0x1f8] sm:$0xff]
    %v181 = vld [vmem:[%s1 + $0x200] sm:$0xff]
    %v182 = vld [vmem:[%s1 + $0x208] sm:$0xff]
    %v183 = vld [vmem:[%s1 + $0x210] sm:$0xff]
    %v184 = vld [vmem:[%s1 + $0x218] sm:$0xff]
    %v185 = vld [vmem:[%s1 + $0x220] sm:$0xff]
    %v186 = vld [vmem:[%s1 + $0x228] sm:$0xff]
    %v187 = vld [vmem:[%s1 + $0x230] sm:$0xff]
    %v188 = vld [vmem:[%s1 + $0x238] sm:$0xff]
    %v189 = vld [vmem:[%s1 + $0x240] sm:$0xff]
    %v190 = vld [vmem:[%s1 + $0x248] sm:$0xff]
    %v191 = vld [vmem:[%s1 + $0x250] sm:$0xff]
    %v192 = vld [vmem:[%s1 + $0x258] sm:$0xff]
    %v193 = vld [vmem:[%s1 + $0x260] sm:$0xff]
    %v194 = vld [vmem:[%s1 + $0x268] sm:$0xff]
    %v195 = vld [vmem:[%s1 + $0x270] sm:$0xff]
    %v196 = vld [vmem:[%s1 + $0x278] sm:$0xff]
    %v197 = vld [vmem:[%s1 + $0x280] sm:$0xff]
    %v198 = vld [vmem:[%s1 + $0x288] sm:$0xff]
    %v199 = vld [vmem:[%s1 + $0x290] sm:$0xff]
    %v200 = vld [vmem:[%s1 + $0x298] sm:$0xff]
    %v201 = vld [vmem:[%s1 + $0x2a0] sm:$0xff]
    %v202 = vld [vmem:[%s1 + $0x2a8] sm:$0xff]
    %v203 = vld [vmem:[%s1 + $0x2b0] sm:$0xff]
    %v204 = vld [vmem:[%s1 + $0x2b8] sm:$0xff]
    %v205 = vld [vmem:[%s1 + $0x2c0] sm:$0xff]
    %v206 = vld [vmem:[%s1 + $0x2c8] sm:$0xff]
    %v207 = vld [vmem:[%s1 + $0x2d0] sm:$0xff]
    %v208 = vld [vmem:[%s1 + $0x2d8] sm:$0xff]
    %v209 = vld [vmem:[%s1 + $0x2e0] sm:$0xff]
    %v210 = vld [vmem:[%s1 + $0x2e8] sm:$0xff]
    %v211 = vld [vmem:[%s1 + $0x2f0] sm:$0xff]
    %v212 = vld [vmem:[%s1 + $0x2f8] sm:$0xff]
    %v213 = vld [vmem:[%s1 + $0x300] sm:$0xff]
    %v214 = vld [vmem:[%s1 + $0x308] sm:$0xff]
    %v215 = vld [vmem:[%s1 + $0x310] sm:$0xff]
    %v216 = vld [vmem:[%s1 + $0x318] sm:$0xff]
    %v217 = vld [vmem:[%s1 + $0x320] sm:$0xff]
    %v218 = vld [vmem:[%s1 + $0x328] sm:$0xff]
    %v219 = vld [vmem:[%s1 + $0x330] sm:$0xff]
    %v220 = vld [vmem:[%s1 + $0x338] sm:$0xff]
    %v221 = vld [vmem:[%s1 + $0x340] sm:$0xff]
    %v222 = vld [vmem:[%s1 + $0x348] sm:$0xff]
    %v223 = vld [vmem:[%s1 + $0x350] sm:$0xff]
    %v224 = vld [vmem:[%s1 + $0x358] sm:$0xff]
    %v225 = vld [vmem:[%s1 + $0x360] sm:$0xff]
    %v226 = vld [vmem:[%s1 + $0x368] sm:$0xff]
    %v227 = vld [vmem:[%s1 + $0x370] sm:$0xff]
    %v228 = vld [vmem:[%s1 + $0x378] sm:$0xff]
    %v229 = vld [vmem:[%s1 + $0x380] sm:$0xff]
    %v230 = vld [vmem:[%s1 + $0x388] sm:$0xff]
    %v231 = vld [vmem:[%s1 + $0x390] sm:$0xff]
    %v232 = vld [vmem:[%s1 + $0x398] sm:$0xff]
    %v233 = vld [vmem:[%s1 + $0x3a0] sm:$0xff]
    %v234 = vld [vmem:[%s1 + $0x3a8] sm:$0xff]
    %v235 = vld [vmem:[%s1 + $0x3b0] sm:$0xff]
    %v236 = vld [vmem:[%s1 + $0x3b8] sm:$0xff]
    %v237 = vld [vmem:[%s1 + $0x3c0] sm:$0xff]
    %v238 = vld [vmem:[%s1 + $0x3c8] sm:$0xff]
    %v239 = vld [vmem:[%s1 + $0x3d0] sm:$0xff]
    %v240 = vld [vmem:[%s1 + $0x3d8] sm:$0xff]
    %v241 = vld [vmem:[%s1 + $0x3e0] sm:$0xff]
    %v242 = vld [vmem:[%s1 + $0x3e8] sm:$0xff]
    %v243 = vld [vmem:[%s1 + $0x3f0] sm:$0xff]
    %v244 = vld [vmem:[%s1 + $0x3f8] sm:$0xff]
    %v245 = vld [vmem:[%s1 + $0x400] sm:$0xff]
    %v246 = vld [vmem:[%s1 + $0x408] sm:$0xff]
    %v247 = vld [vmem:[%s1 + $0x410] sm:$0xff]
    %v248 = vld [vmem:[%s1 + $0x418] sm:$0xff]
    %v249 = vld [vmem:[%s1 + $0x420] sm:$0xff]
    %v250 = vld [vmem:[%s1 + $0x428] sm:$0xff]
    %v251 = vld [vmem:[%s1 + $0x430] sm:$0xff]
    %v252 = vld [vmem:[%s1 + $0x438] sm:$0xff]
    %v253 = vld [vmem:[%s1 + $0x440] sm:$0xff]
    %v254 = vld [vmem:[%s1 + $0x448] sm:$0xff]
    %v255 = vld [vmem:[%s1 + $0x450] sm:$0xff]
    %v256 = vld [vmem:[%s1 + $0x458] sm:$0xff]
    %v257 = vld [vmem:[%s1 + $0x460] sm:$0xff]
    %v258 = vld [vmem:[%s1 + $0x468] sm:$0xff]
    %v259 = vld [vmem:[%s1 + $0x470] sm:$0xff]
    %v260 = vld [vmem:[%s1 + $0x478] sm:$0xff]
    %v261 = vld [vmem:[%s1 + $0x480] sm:$0xff]
    %v262 = vld [vmem:[%s1 + $0x488] sm:$0xff]
    %v263 = vld [vmem:[%s1 + $0x490] sm:$0xff]
    %v264 = vld [vmem:[%s1 + $0x498] sm:$0xff]
    %v265 = vld [vmem:[%s1 + $0x4a0] sm:$0xff]
    %v266 = vld [vmem:[%s1 + $0x4a8] sm:$0xff]
    %v267 = vld [vmem:[%s1 + $0x4b0] sm:$0xff]
    %v268 = vld [vmem:[%s1 + $0x4b8] sm:$0xff]
    %v269 = vld [vmem:[%s1 + $0x4c0] sm:$0xff]
    %v270 = vld [vmem:[%s1 + $0x4c8] sm:$0xff]
    %v271 = vld [vmem:[%s1 + $0x4d0] sm:$0xff]
    %v272 = vld [vmem:[%s1 + $0x4d8] sm:$0xff]
    %v273 = vld [vmem:[%s1 + $0x4e0] sm:$0xff]
    %v274 = vld [vmem:[%s1 + $0x4e8] sm:$0xff]
    %v275 = vld [vmem:[%s1 + $0x4f0] sm:$0xff]
    %v276 = vld [vmem:[%s1 + $0x4f8] sm:$0xff]
    %v277 = vld [vmem:[%s1 + $0x500] sm:$0xff]
    %v278 = vld [vmem:[%s1 + $0x508] sm:$0xff]
    %v279 = vld [vmem:[%s1 + $0x510] sm:$0xff]
    %v280 = vld [vmem:[%s1 + $0x518] sm:$0xff]
    %v281 = vld [vmem:[%s1 + $0x520] sm:$0xff]
    %v282 = vld [vmem:[%s1 + $0x528] sm:$0xff]
    %v283 = vld [vmem:[%s1 + $0x530] sm:$0xff]
    %v284 = vld [vmem:[%s1 + $0x538] sm:$0xff]
    %v285 = vld [vmem:[%s1 + $0x540] sm:$0xff]
    %v286 = vld [vmem:[%s1 + $0x548] sm:$0xff]
    %v287 = vld [vmem:[%s1 + $0x550] sm:$0xff]
    %v288 = vld [vmem:[%s1 + $0x558] sm:$0xff]
    %v289 = vld [vmem:[%s1 + $0x560] sm:$0xff]
    %v290 = vld [vmem:[%s1 + $0x568] sm:$0xff]
    %v291 = vld [vmem:[%s1 + $0x570] sm:$0xff]
    %v292 = vld [vmem:[%s1 + $0x578] sm:$0xff]
    %v293 = vld [vmem:[%s1 + $0x580] sm:$0xff]
    %v294 = vld [vmem:[%s1 + $0x588] sm:$0xff]
    %v295 = vld [vmem:[%s1 + $0x590] sm:$0xff]
    %v296 = vld [vmem:[%s1 + $0x598] sm:$0xff]
    %v297 = vld [vmem:[%s1 + $0x5a0] sm:$0xff]
    %v298 = vld [vmem:[%s1 + $0x5a8] sm:$0xff]
    %v299 = vld [vmem:[%s1 + $0x5b0] sm:$0xff]
    %v300 = vld [vmem:[%s1 + $0x5b8] sm:$0xff]
    %v301 = vld [vmem:[%s1 + $0x5c0] sm:$0xff]
    %v302 = vld [vmem:[%s1 + $0x5c8] sm:$0xff]
    %v303 = vld [vmem:[%s1 + $0x5d0] sm:$0xff]
    %v304 = vld [vmem:[%s1 + $0x5d8] sm:$0xff]
    %v305 = vld [vmem:[%s1 + $0x5e0] sm:$0xff]
    %v306 = vld [vmem:[%s1 + $0x5e8] sm:$0xff]
    %v307 = vld [vmem:[%s1 + $0x5f0] sm:$0xff]
    %v308 = vld [vmem:[%s1 + $0x5f8] sm:$0xff]
    %v309 = vld [vmem:[%s1 + $0x600] sm:$0xff]
    %v310 = vld [vmem:[%s1 + $0x608] sm:$0xff]
    %v311 = vld [vmem:[%s1 + $0x610] sm:$0xff]
    %v312 = vld [vmem:[%s1 + $0x618] sm:$0xff]
    %v313 = vld [vmem:[%s2] sm:$0xf]
    %v315 = vperm.slane %v313, 0
    %v316 = vperm.slane %v313, 1
    %v317 = vperm.slane %v313, 2
    %v318 = vperm.slane %v313, 3
    %v519 = vunpack.c.l.b16 %v117
    %v520 = vunpack.c.h.b16 %v117
    %v521 = vunpack.c.l.b16 %v118
    %v522 = vunpack.c.h.b16 %v118
    %v523 = vunpack.c.l.b16 %v119
    %v524 = vunpack.c.h.b16 %v119
    %v525 = vunpack.c.l.b16 %v120
    %v526 = vunpack.c.h.b16 %v120
    %v527 = vunpack.c.l.b16 %v121
    %v528 = vunpack.c.h.b16 %v121
    %v529 = vunpack.c.l.b16 %v122
    %v530 = vunpack.c.h.b16 %v122
    %v531 = vunpack.c.l.b16 %v123
    %v532 = vunpack.c.h.b16 %v123
    %v533 = vunpack.c.l.b16 %v124
    %v534 = vunpack.c.h.b16 %v124
    %v535 = vunpack.c.l.b16 %v125
    %v536 = vunpack.c.h.b16 %v125
    %v537 = vunpack.c.l.b16 %v126
    %v538 = vunpack.c.h.b16 %v126
    %v539 = vunpack.c.l.b16 %v127
    %v540 = vunpack.c.h.b16 %v127
    %v541 = vunpack.c.l.b16 %v128
    %v542 = vunpack.c.h.b16 %v128
    %v543 = vunpack.c.l.b16 %v129
    %v544 = vunpack.c.h.b16 %v129
    %v545 = vunpack.c.l.b16 %v130
    %v546 = vunpack.c.h.b16 %v130
    %v547 = vunpack.c.l.b16 %v131
    %v548 = vunpack.c.h.b16 %v131
    %v549 = vunpack.c.l.b16 %v132
    %v550 = vunpack.c.h.b16 %v132
    %v551 = vunpack.c.l.b16 %v133
    %v552 = vunpack.c.h.b16 %v133
    %v553 = vunpack.c.l.b16 %v134
    %v554 = vunpack.c.h.b16 %v134
    %v555 = vunpack.c.l.b16 %v135
    %v556 = vunpack.c.h.b16 %v135
    %v557 = vunpack.c.l.b16 %v136
    %v558 = vunpack.c.h.b16 %v136
    %v559 = vunpack.c.l.b16 %v137
    %v560 = vunpack.c.h.b16 %v137
    %v561 = vunpack.c.l.b16 %v138
    %v562 = vunpack.c.h.b16 %v138
    %v563 = vunpack.c.l.b16 %v139
    %v564 = vunpack.c.h.b16 %v139
    %v565 = vunpack.c.l.b16 %v140
    %v566 = vunpack.c.h.b16 %v140
    %v567 = vunpack.c.l.b16 %v141
    %v568 = vunpack.c.h.b16 %v141
    %v569 = vunpack.c.l.b16 %v142
    %v570 = vunpack.c.h.b16 %v142
    %v571 = vunpack.c.l.b16 %v143
    %v572 = vunpack.c.h.b16 %v143
    %v573 = vunpack.c.l.b16 %v144
    %v574 = vunpack.c.h.b16 %v144
    %v575 = vunpack.c.l.b16 %v145
    %v576 = vunpack.c.h.b16 %v145
    %v577 = vunpack.c.l.b16 %v146
    %v578 = vunpack.c.h.b16 %v146
    %v579 = vunpack.c.l.b16 %v147
    %v580 = vunpack.c.h.b16 %v147
    %v581 = vunpack.c.l.b16 %v148
    %v582 = vunpack.c.h.b16 %v148
    %v583 = vunpack.c.l.b16 %v149
    %v584 = vunpack.c.h.b16 %v149
    %v585 = vunpack.c.l.b16 %v150
    %v586 = vunpack.c.h.b16 %v150
    %v587 = vunpack.c.l.b16 %v151
    %v588 = vunpack.c.h.b16 %v151
    %v589 = vunpack.c.l.b16 %v152
    %v590 = vunpack.c.h.b16 %v152
    %v591 = vunpack.c.l.b16 %v153
    %v592 = vunpack.c.h.b16 %v153
    %v593 = vunpack.c.l.b16 %v154
    %v594 = vunpack.c.h.b16 %v154
    %v595 = vunpack.c.l.b16 %v155
    %v596 = vunpack.c.h.b16 %v155
    %v597 = vunpack.c.l.b16 %v156
    %v598 = vunpack.c.h.b16 %v156
    %v599 = vunpack.c.l.b16 %v157
    %v600 = vunpack.c.h.b16 %v157
    %v601 = vunpack.c.l.b16 %v158
    %v602 = vunpack.c.h.b16 %v158
    %v603 = vunpack.c.l.b16 %v159
    %v604 = vunpack.c.h.b16 %v159
    %v605 = vunpack.c.l.b16 %v160
    %v606 = vunpack.c.h.b16 %v160
    %v607 = vunpack.c.l.b16 %v161
    %v608 = vunpack.c.h.b16 %v161
    %v609 = vunpack.c.l.b16 %v162
    %v610 = vunpack.c.h.b16 %v162
    %v611 = vunpack.c.l.b16 %v163
    %v612 = vunpack.c.h.b16 %v163
    %v613 = vunpack.c.l.b16 %v164
    %v614 = vunpack.c.h.b16 %v164
    %v615 = vunpack.c.l.b16 %v165
    %v616 = vunpack.c.h.b16 %v165
    %v617 = vunpack.c.l.b16 %v166
    %v618 = vunpack.c.h.b16 %v166
    %v619 = vunpack.c.l.b16 %v167
    %v620 = vunpack.c.h.b16 %v167
    %v621 = vunpack.c.l.b16 %v168
    %v622 = vunpack.c.h.b16 %v168
    %v623 = vunpack.c.l.b16 %v169
    %v624 = vunpack.c.h.b16 %v169
    %v625 = vunpack.c.l.b16 %v170
    %v626 = vunpack.c.h.b16 %v170
    %v627 = vunpack.c.l.b16 %v171
    %v628 = vunpack.c.h.b16 %v171
    %v629 = vunpack.c.l.b16 %v172
    %v630 = vunpack.c.h.b16 %v172
    %v631 = vunpack.c.l.b16 %v173
    %v632 = vunpack.c.h.b16 %v173
    %v633 = vunpack.c.l.b16 %v174
    %v634 = vunpack.c.h.b16 %v174
    %v635 = vunpack.c.l.b16 %v175
    %v636 = vunpack.c.h.b16 %v175
    %v637 = vunpack.c.l.b16 %v176
    %v638 = vunpack.c.h.b16 %v176
    %v639 = vunpack.c.l.b16 %v177
    %v640 = vunpack.c.h.b16 %v177
    %v641 = vunpack.c.l.b16 %v178
    %v642 = vunpack.c.h.b16 %v178
    %v643 = vunpack.c.l.b16 %v179
    %v644 = vunpack.c.h.b16 %v179
    %v645 = vunpack.c.l.b16 %v180
    %v646 = vunpack.c.h.b16 %v180
    %v647 = vunpack.c.l.b16 %v181
    %v648 = vunpack.c.h.b16 %v181
    %v649 = vunpack.c.l.b16 %v182
    %v650 = vunpack.c.h.b16 %v182
    %v651 = vunpack.c.l.b16 %v183
    %v652 = vunpack.c.h.b16 %v183
    %v653 = vunpack.c.l.b16 %v184
    %v654 = vunpack.c.h.b16 %v184
    %v655 = vunpack.c.l.b16 %v185
    %v656 = vunpack.c.h.b16 %v185
    %v657 = vunpack.c.l.b16 %v186
    %v658 = vunpack.c.h.b16 %v186
    %v659 = vunpack.c.l.b16 %v187
    %v660 = vunpack.c.h.b16 %v187
    %v661 = vunpack.c.l.b16 %v188
    %v662 = vunpack.c.h.b16 %v188
    %v663 = vunpack.c.l.b16 %v189
    %v664 = vunpack.c.h.b16 %v189
    %v665 = vunpack.c.l.b16 %v190
    %v666 = vunpack.c.h.b16 %v190
    %v667 = vunpack.c.l.b16 %v191
    %v668 = vunpack.c.h.b16 %v191
    %v669 = vunpack.c.l.b16 %v192
    %v670 = vunpack.c.h.b16 %v192
    %v671 = vunpack.c.l.b16 %v193
    %v672 = vunpack.c.h.b16 %v193
    %v673 = vunpack.c.l.b16 %v194
    %v674 = vunpack.c.h.b16 %v194
    %v675 = vunpack.c.l.b16 %v195
    %v676 = vunpack.c.h.b16 %v195
    %v677 = vunpack.c.l.b16 %v196
    %v678 = vunpack.c.h.b16 %v196
    %v679 = vunpack.c.l.b16 %v197
    %v680 = vunpack.c.h.b16 %v197
    %v681 = vunpack.c.l.b16 %v198
    %v682 = vunpack.c.h.b16 %v198
    %v683 = vunpack.c.l.b16 %v199
    %v684 = vunpack.c.h.b16 %v199
    %v685 = vunpack.c.l.b16 %v200
    %v686 = vunpack.c.h.b16 %v200
    %v687 = vunpack.c.l.b16 %v201
    %v688 = vunpack.c.h.b16 %v201
    %v689 = vunpack.c.l.b16 %v202
    %v690 = vunpack.c.h.b16 %v202
    %v691 = vunpack.c.l.b16 %v203
    %v692 = vunpack.c.h.b16 %v203
    %v693 = vunpack.c.l.b16 %v204
    %v694 = vunpack.c.h.b16 %v204
    %v695 = vunpack.c.l.b16 %v205
    %v696 = vunpack.c.h.b16 %v205
    %v697 = vunpack.c.l.b16 %v206
    %v698 = vunpack.c.h.b16 %v206
    %v699 = vunpack.c.l.b16 %v207
    %v700 = vunpack.c.h.b16 %v207
    %v701 = vunpack.c.l.b16 %v208
    %v702 = vunpack.c.h.b16 %v208
    %v703 = vunpack.c.l.b16 %v209
    %v704 = vunpack.c.h.b16 %v209
    %v705 = vunpack.c.l.b16 %v210
    %v706 = vunpack.c.h.b16 %v210
    %v707 = vunpack.c.l.b16 %v211
    %v708 = vunpack.c.h.b16 %v211
    %v709 = vunpack.c.l.b16 %v212
    %v710 = vunpack.c.h.b16 %v212
    %v711 = vunpack.c.l.b16 %v213
    %v712 = vunpack.c.h.b16 %v213
    %v713 = vunpack.c.l.b16 %v214
    %v714 = vunpack.c.h.b16 %v214
    %v715 = vunpack.c.l.b16 %v215
    %v716 = vunpack.c.h.b16 %v215
    %v717 = vunpack.c.l.b16 %v216
    %v718 = vunpack.c.h.b16 %v216
    %v719 = vunpack.c.l.b16 %v217
    %v720 = vunpack.c.h.b16 %v217
    %v721 = vunpack.c.l.b16 %v218
    %v722 = vunpack.c.h.b16 %v218
    %v723 = vunpack.c.l.b16 %v219
    %v724 = vunpack.c.h.b16 %v219
    %v725 = vunpack.c.l.b16 %v220
    %v726 = vunpack.c.h.b16 %v220
    %v727 = vunpack.c.l.b16 %v221
    %v728 = vunpack.c.h.b16 %v221
    %v729 = vunpack.c.l.b16 %v222
    %v730 = vunpack.c.h.b16 %v222
    %v731 = vunpack.c.l.b16 %v223
    %v732 = vunpack.c.h.b16 %v223
    %v733 = vunpack.c.l.b16 %v224
    %v734 = vunpack.c.h.b16 %v224
    %v735 = vunpack.c.l.b16 %v225
    %v736 = vunpack.c.h.b16 %v225
    %v737 = vunpack.c.l.b16 %v226
    %v738 = vunpack.c.h.b16 %v226
    %v739 = vunpack.c.l.b16 %v227
    %v740 = vunpack.c.h.b16 %v227
    %v741 = vunpack.c.l.b16 %v228
    %v742 = vunpack.c.h.b16 %v228
    %v743 = vunpack.c.l.b16 %v229
    %v744 = vunpack.c.h.b16 %v229
    %v745 = vunpack.c.l.b16 %v230
    %v746 = vunpack.c.h.b16 %v230
    %v747 = vunpack.c.l.b16 %v231
    %v748 = vunpack.c.h.b16 %v231
    %v749 = vunpack.c.l.b16 %v232
    %v750 = vunpack.c.h.b16 %v232
    %v751 = vunpack.c.l.b16 %v233
    %v752 = vunpack.c.h.b16 %v233
    %v753 = vunpack.c.l.b16 %v234
    %v754 = vunpack.c.h.b16 %v234
    %v755 = vunpack.c.l.b16 %v235
    %v756 = vunpack.c.h.b16 %v235
    %v757 = vunpack.c.l.b16 %v236
    %v758 = vunpack.c.h.b16 %v236
    %v759 = vunpack.c.l.b16 %v237
    %v760 = vunpack.c.h.b16 %v237
    %v761 = vunpack.c.l.b16 %v238
    %v762 = vunpack.c.h.b16 %v238
    %v763 = vunpack.c.l.b16 %v239
    %v764 = vunpack.c.h.b16 %v239
    %v765 = vunpack.c.l.b16 %v240
    %v766 = vunpack.c.h.b16 %v240
    %v767 = vunpack.c.l.b16 %v241
    %v768 = vunpack.c.h.b16 %v241
    %v769 = vunpack.c.l.b16 %v242
    %v770 = vunpack.c.h.b16 %v242
    %v771 = vunpack.c.l.b16 %v243
    %v772 = vunpack.c.h.b16 %v243
    %v773 = vunpack.c.l.b16 %v244
    %v774 = vunpack.c.h.b16 %v244
    %v775 = vunpack.c.l.b16 %v245
    %v776 = vunpack.c.h.b16 %v245
    %v777 = vunpack.c.l.b16 %v246
    %v778 = vunpack.c.h.b16 %v246
    %v779 = vunpack.c.l.b16 %v247
    %v780 = vunpack.c.h.b16 %v247
    %v781 = vunpack.c.l.b16 %v248
    %v782 = vunpack.c.h.b16 %v248
    %v783 = vunpack.c.l.b16 %v249
    %v784 = vunpack.c.h.b16 %v249
    %v785 = vunpack.c.l.b16 %v250
    %v786 = vunpack.c.h.b16 %v250
    %v787 = vunpack.c.l.b16 %v251
    %v788 = vunpack.c.h.b16 %v251
    %v789 = vunpack.c.l.b16 %v252
    %v790 = vunpack.c.h.b16 %v252
    %v791 = vunpack.c.l.b16 %v253
    %v792 = vunpack.c.h.b16 %v253
    %v793 = vunpack.c.l.b16 %v254
    %v794 = vunpack.c.h.b16 %v254
    %v795 = vunpack.c.l.b16 %v255
    %v796 = vunpack.c.h.b16 %v255
    %v797 = vunpack.c.l.b16 %v256
    %v798 = vunpack.c.h.b16 %v256
    %v799 = vunpack.c.l.b16 %v257
    %v800 = vunpack.c.h.b16 %v257
    %v801 = vunpack.c.l.b16 %v258
    %v802 = vunpack.c.h.b16 %v258
    %v803 = vunpack.c.l.b16 %v259
    %v804 = vunpack.c.h.b16 %v259
    %v805 = vunpack.c.l.b16 %v260
    %v806 = vunpack.c.h.b16 %v260
    %v807 = vunpack.c.l.b16 %v261
    %v808 = vunpack.c.h.b16 %v261
    %v809 = vunpack.c.l.b16 %v262
    %v810 = vunpack.c.h.b16 %v262
    %v811 = vunpack.c.l.b16 %v263
    %v812 = vunpack.c.h.b16 %v263
    %v813 = vunpack.c.l.b16 %v264
    %v814 = vunpack.c.h.b16 %v264
    %v815 = vunpack.c.l.b16 %v265
    %v816 = vunpack.c.h.b16 %v265
    %v817 = vunpack.c.l.b16 %v266
    %v818 = vunpack.c.h.b16 %v266
    %v819 = vunpack.c.l.b16 %v267
    %v820 = vunpack.c.h.b16 %v267
    %v821 = vunpack.c.l.b16 %v268
    %v822 = vunpack.c.h.b16 %v268
    %v823 = vunpack.c.l.b16 %v269
    %v824 = vunpack.c.h.b16 %v269
    %v825 = vunpack.c.l.b16 %v270
    %v826 = vunpack.c.h.b16 %v270
    %v827 = vunpack.c.l.b16 %v271
    %v828 = vunpack.c.h.b16 %v271
    %v829 = vunpack.c.l.b16 %v272
    %v830 = vunpack.c.h.b16 %v272
    %v831 = vunpack.c.l.b16 %v273
    %v832 = vunpack.c.h.b16 %v273
    %v833 = vunpack.c.l.b16 %v274
    %v834 = vunpack.c.h.b16 %v274
    %v835 = vunpack.c.l.b16 %v275
    %v836 = vunpack.c.h.b16 %v275
    %v837 = vunpack.c.l.b16 %v276
    %v838 = vunpack.c.h.b16 %v276
    %v839 = vunpack.c.l.b16 %v277
    %v840 = vunpack.c.h.b16 %v277
    %v841 = vunpack.c.l.b16 %v278
    %v842 = vunpack.c.h.b16 %v278
    %v843 = vunpack.c.l.b16 %v279
    %v844 = vunpack.c.h.b16 %v279
    %v845 = vunpack.c.l.b16 %v280
    %v846 = vunpack.c.h.b16 %v280
    %v847 = vunpack.c.l.b16 %v281
    %v848 = vunpack.c.h.b16 %v281
    %v849 = vunpack.c.l.b16 %v282
    %v850 = vunpack.c.h.b16 %v282
    %v851 = vunpack.c.l.b16 %v283
    %v852 = vunpack.c.h.b16 %v283
    %v853 = vunpack.c.l.b16 %v284
    %v854 = vunpack.c.h.b16 %v284
    %v855 = vunpack.c.l.b16 %v285
    %v856 = vunpack.c.h.b16 %v285
    %v857 = vunpack.c.l.b16 %v286
    %v858 = vunpack.c.h.b16 %v286
    %v859 = vunpack.c.l.b16 %v287
    %v860 = vunpack.c.h.b16 %v287
    %v861 = vunpack.c.l.b16 %v288
    %v862 = vunpack.c.h.b16 %v288
    %v863 = vunpack.c.l.b16 %v289
    %v864 = vunpack.c.h.b16 %v289
    %v865 = vunpack.c.l.b16 %v290
    %v866 = vunpack.c.h.b16 %v290
    %v867 = vunpack.c.l.b16 %v291
    %v868 = vunpack.c.h.b16 %v291
    %v869 = vunpack.c.l.b16 %v292
    %v870 = vunpack.c.h.b16 %v292
    %v871 = vunpack.c.l.b16 %v293
    %v872 = vunpack.c.h.b16 %v293
    %v873 = vunpack.c.l.b16 %v294
    %v874 = vunpack.c.h.b16 %v294
    %v875 = vunpack.c.l.b16 %v295
    %v876 = vunpack.c.h.b16 %v295
    %v877 = vunpack.c.l.b16 %v296
    %v878 = vunpack.c.h.b16 %v296
    %v879 = vunpack.c.l.b16 %v297
    %v880 = vunpack.c.h.b16 %v297
    %v881 = vunpack.c.l.b16 %v298
    %v882 = vunpack.c.h.b16 %v298
    %v883 = vunpack.c.l.b16 %v299
    %v884 = vunpack.c.h.b16 %v299
    %v885 = vunpack.c.l.b16 %v300
    %v886 = vunpack.c.h.b16 %v300
    %v887 = vunpack.c.l.b16 %v301
    %v888 = vunpack.c.h.b16 %v301
    %v889 = vunpack.c.l.b16 %v302
    %v890 = vunpack.c.h.b16 %v302
    %v891 = vunpack.c.l.b16 %v303
    %v892 = vunpack.c.h.b16 %v303
    %v893 = vunpack.c.l.b16 %v304
    %v894 = vunpack.c.h.b16 %v304
    %v895 = vunpack.c.l.b16 %v305
    %v896 = vunpack.c.h.b16 %v305
    %v897 = vunpack.c.l.b16 %v306
    %v898 = vunpack.c.h.b16 %v306
    %v899 = vunpack.c.l.b16 %v307
    %v900 = vunpack.c.h.b16 %v307
    %v901 = vunpack.c.l.b16 %v308
    %v902 = vunpack.c.h.b16 %v308
    %v903 = vunpack.c.l.b16 %v309
    %v904 = vunpack.c.h.b16 %v309
    %v905 = vunpack.c.l.b16 %v310
    %v906 = vunpack.c.h.b16 %v310
    %v907 = vunpack.c.l.b16 %v311
    %v908 = vunpack.c.h.b16 %v311
    %v909 = vunpack.c.l.b16 %v312
    %v910 = vunpack.c.h.b16 %v312
    %v911 = vpack.c.b16 %v523, %v519
    %v912 = vpack.c.b16 %v524, %v520
    %v913 = vpack.c.b16 %v525, %v521
    %v914 = vpack.c.b16 %v526, %v522
    %v915 = vpack.c.b16 %v531, %v527
    %v916 = vpack.c.b16 %v532, %v528
    %v917 = vpack.c.b16 %v533, %v529
    %v918 = vpack.c.b16 %v534, %v530
    %v919 = vpack.c.b16 %v539, %v535
    %v920 = vpack.c.b16 %v540, %v536
    %v921 = vpack.c.b16 %v541, %v537
    %v922 = vpack.c.b16 %v542, %v538
    %v923 = vpack.c.b16 %v547, %v543
    %v924 = vpack.c.b16 %v548, %v544
    %v925 = vpack.c.b16 %v549, %v545
    %v926 = vpack.c.b16 %v550, %v546
    %v927 = vpack.c.b16 %v555, %v551
    %v928 = vpack.c.b16 %v556, %v552
    %v929 = vpack.c.b16 %v557, %v553
    %v930 = vpack.c.b16 %v558, %v554
    %v931 = vpack.c.b16 %v563, %v559
    %v932 = vpack.c.b16 %v564, %v560
    %v933 = vpack.c.b16 %v565, %v561
    %v934 = vpack.c.b16 %v566, %v562
    %v935 = vpack.c.b16 %v571, %v567
    %v936 = vpack.c.b16 %v572, %v568
    %v937 = vpack.c.b16 %v573, %v569
    %v938 = vpack.c.b16 %v574, %v570
    %v939 = vpack.c.b16 %v579, %v575
    %v940 = vpack.c.b16 %v580, %v576
    %v941 = vpack.c.b16 %v581, %v577
    %v942 = vpack.c.b16 %v582, %v578
    %v943 = vpack.c.b16 %v587, %v583
    %v944 = vpack.c.b16 %v588, %v584
    %v945 = vpack.c.b16 %v589, %v585
    %v946 = vpack.c.b16 %v590, %v586
    %v947 = vpack.c.b16 %v595, %v591
    %v948 = vpack.c.b16 %v596, %v592
    %v949 = vpack.c.b16 %v597, %v593
    %v950 = vpack.c.b16 %v598, %v594
    %v951 = vpack.c.b16 %v603, %v599
    %v952 = vpack.c.b16 %v604, %v600
    %v953 = vpack.c.b16 %v605, %v601
    %v954 = vpack.c.b16 %v606, %v602
    %v955 = vpack.c.b16 %v611, %v607
    %v956 = vpack.c.b16 %v612, %v608
    %v957 = vpack.c.b16 %v613, %v609
    %v958 = vpack.c.b16 %v614, %v610
    %v959 = vpack.c.b16 %v619, %v615
    %v960 = vpack.c.b16 %v620, %v616
    %v961 = vpack.c.b16 %v621, %v617
    %v962 = vpack.c.b16 %v622, %v618
    %v963 = vpack.c.b16 %v627, %v623
    %v964 = vpack.c.b16 %v628, %v624
    %v965 = vpack.c.b16 %v629, %v625
    %v966 = vpack.c.b16 %v630, %v626
    %v967 = vpack.c.b16 %v635, %v631
    %v968 = vpack.c.b16 %v636, %v632
    %v969 = vpack.c.b16 %v637, %v633
    %v970 = vpack.c.b16 %v638, %v634
    %v971 = vpack.c.b16 %v643, %v639
    %v972 = vpack.c.b16 %v644, %v640
    %v973 = vpack.c.b16 %v645, %v641
    %v974 = vpack.c.b16 %v646, %v642
    %v975 = vpack.c.b16 %v651, %v647
    %v976 = vpack.c.b16 %v652, %v648
    %v977 = vpack.c.b16 %v653, %v649
    %v978 = vpack.c.b16 %v654, %v650
    %v979 = vpack.c.b16 %v659, %v655
    %v980 = vpack.c.b16 %v660, %v656
    %v981 = vpack.c.b16 %v661, %v657
    %v982 = vpack.c.b16 %v662, %v658
    %v983 = vpack.c.b16 %v667, %v663
    %v984 = vpack.c.b16 %v668, %v664
    %v985 = vpack.c.b16 %v669, %v665
    %v986 = vpack.c.b16 %v670, %v666
    %v987 = vpack.c.b16 %v675, %v671
    %v988 = vpack.c.b16 %v676, %v672
    %v989 = vpack.c.b16 %v677, %v673
    %v990 = vpack.c.b16 %v678, %v674
    %v991 = vpack.c.b16 %v683, %v679
    %v992 = vpack.c.b16 %v684, %v680
    %v993 = vpack.c.b16 %v685, %v681
    %v994 = vpack.c.b16 %v686, %v682
    %v995 = vpack.c.b16 %v691, %v687
    %v996 = vpack.c.b16 %v692, %v688
    %v997 = vpack.c.b16 %v693, %v689
    %v998 = vpack.c.b16 %v694, %v690
    %v999 = vpack.c.b16 %v699, %v695
    %v1000 = vpack.c.b16 %v700, %v696
    %v1001 = vpack.c.b16 %v701, %v697
    %v1002 = vpack.c.b16 %v702, %v698
    %v1003 = vpack.c.b16 %v707, %v703
    %v1004 = vpack.c.b16 %v708, %v704
    %v1005 = vpack.c.b16 %v709, %v705
    %v1006 = vpack.c.b16 %v710, %v706
    %v1007 = vpack.c.b16 %v715, %v711
    %v1008 = vpack.c.b16 %v716, %v712
    %v1009 = vpack.c.b16 %v717, %v713
    %v1010 = vpack.c.b16 %v718, %v714
    %v1011 = vpack.c.b16 %v723, %v719
    %v1012 = vpack.c.b16 %v724, %v720
    %v1013 = vpack.c.b16 %v725, %v721
    %v1014 = vpack.c.b16 %v726, %v722
    %v1015 = vpack.c.b16 %v731, %v727
    %v1016 = vpack.c.b16 %v732, %v728
    %v1017 = vpack.c.b16 %v733, %v729
    %v1018 = vpack.c.b16 %v734, %v730
    %v1019 = vpack.c.b16 %v739, %v735
    %v1020 = vpack.c.b16 %v740, %v736
    %v1021 = vpack.c.b16 %v741, %v737
    %v1022 = vpack.c.b16 %v742, %v738
    %v1023 = vpack.c.b16 %v747, %v743
    %v1024 = vpack.c.b16 %v748, %v744
    %v1025 = vpack.c.b16 %v749, %v745
    %v1026 = vpack.c.b16 %v750, %v746
    %v1027 = vpack.c.b16 %v755, %v751
    %v1028 = vpack.c.b16 %v756, %v752
    %v1029 = vpack.c.b16 %v757, %v753
    %v1030 = vpack.c.b16 %v758, %v754
    %v1031 = vpack.c.b16 %v763, %v759
    %v1032 = vpack.c.b16 %v764, %v760
    %v1033 = vpack.c.b16 %v765, %v761
    %v1034 = vpack.c.b16 %v766, %v762
    %v1035 = vpack.c.b16 %v771, %v767
    %v1036 = vpack.c.b16 %v772, %v768
    %v1037 = vpack.c.b16 %v773, %v769
    %v1038 = vpack.c.b16 %v774, %v770
    %v1039 = vpack.c.b16 %v779, %v775
    %v1040 = vpack.c.b16 %v780, %v776
    %v1041 = vpack.c.b16 %v781, %v777
    %v1042 = vpack.c.b16 %v782, %v778
    %v1043 = vpack.c.b16 %v787, %v783
    %v1044 = vpack.c.b16 %v788, %v784
    %v1045 = vpack.c.b16 %v789, %v785
    %v1046 = vpack.c.b16 %v790, %v786
    %v1047 = vpack.c.b16 %v795, %v791
    %v1048 = vpack.c.b16 %v796, %v792
    %v1049 = vpack.c.b16 %v797, %v793
    %v1050 = vpack.c.b16 %v798, %v794
    %v1051 = vpack.c.b16 %v803, %v799
    %v1052 = vpack.c.b16 %v804, %v800
    %v1053 = vpack.c.b16 %v805, %v801
    %v1054 = vpack.c.b16 %v806, %v802
    %v1055 = vpack.c.b16 %v811, %v807
    %v1056 = vpack.c.b16 %v812, %v808
    %v1057 = vpack.c.b16 %v813, %v809
    %v1058 = vpack.c.b16 %v814, %v810
    %v1059 = vpack.c.b16 %v819, %v815
    %v1060 = vpack.c.b16 %v820, %v816
    %v1061 = vpack.c.b16 %v821, %v817
    %v1062 = vpack.c.b16 %v822, %v818
    %v1063 = vpack.c.b16 %v827, %v823
    %v1064 = vpack.c.b16 %v828, %v824
    %v1065 = vpack.c.b16 %v829, %v825
    %v1066 = vpack.c.b16 %v830, %v826
    %v1067 = vpack.c.b16 %v835, %v831
    %v1068 = vpack.c.b16 %v836, %v832
    %v1069 = vpack.c.b16 %v837, %v833
    %v1070 = vpack.c.b16 %v838, %v834
    %v1071 = vpack.c.b16 %v843, %v839
    %v1072 = vpack.c.b16 %v844, %v840
    %v1073 = vpack.c.b16 %v845, %v841
    %v1074 = vpack.c.b16 %v846, %v842
    %v1075 = vpack.c.b16 %v851, %v847
    %v1076 = vpack.c.b16 %v852, %v848
    %v1077 = vpack.c.b16 %v853, %v849
    %v1078 = vpack.c.b16 %v854, %v850
    %v1079 = vpack.c.b16 %v859, %v855
    %v1080 = vpack.c.b16 %v860, %v856
    %v1081 = vpack.c.b16 %v861, %v857
    %v1082 = vpack.c.b16 %v862, %v858
    %v1083 = vpack.c.b16 %v867, %v863
    %v1084 = vpack.c.b16 %v868, %v864
    %v1085 = vpack.c.b16 %v869, %v865
    %v1086 = vpack.c.b16 %v870, %v866
    %v1087 = vpack.c.b16 %v875, %v871
    %v1088 = vpack.c.b16 %v876, %v872
    %v1089 = vpack.c.b16 %v877, %v873
    %v1090 = vpack.c.b16 %v878, %v874
    %v1091 = vpack.c.b16 %v883, %v879
    %v1092 = vpack.c.b16 %v884, %v880
    %v1093 = vpack.c.b16 %v885, %v881
    %v1094 = vpack.c.b16 %v886, %v882
    %v1095 = vpack.c.b16 %v891, %v887
    %v1096 = vpack.c.b16 %v892, %v888
    %v1097 = vpack.c.b16 %v893, %v889
    %v1098 = vpack.c.b16 %v894, %v890
    %v1099 = vpack.c.b16 %v899, %v895
    %v1100 = vpack.c.b16 %v900, %v896
    %v1101 = vpack.c.b16 %v901, %v897
    %v1102 = vpack.c.b16 %v902, %v898
    %v1103 = vpack.c.b16 %v907, %v903
    %v1104 = vpack.c.b16 %v908, %v904
    %v1105 = vpack.c.b16 %v909, %v905
    %v1106 = vpack.c.b16 %v910, %v906
    %vm1303 = vcmask 130048
    %v1305 = vsel %vm1303, %v116, 0
    %1307 = vmatpush.bf16.msra.mxu0 %v939
    %1308 = vmatpush.bf16.msra.mxu0 %v935
    %1309 = vmatpush.bf16.msra.mxu0 %v931
    %1310 = vmatpush.bf16.msra.mxu0 %v927
    %1311 = vmatpush.bf16.msra.mxu0 %v923
    %1312 = vmatpush.bf16.msra.mxu0 %v919
    %1313 = vmatpush.bf16.msra.mxu0 %v915
    %1314 = vmatpush.bf16.msra.mxu0 %v911
    %1315 = vmatmul.bf16.gmra.mxu0 %v110
    %v1316 = vpop.f32.mrf.mxu0
    %v1317 = vadd.f32 %v315, %v1316
    %v1318 = vpop.f32.mrf.mxu0
    %v1319 = vadd.f32 %v315, %v1318
    %1320 = vdwg.mxu0
    %1321 = vmatpush.bf16.msra.mxu0 %v971
    %1322 = vmatpush.bf16.msra.mxu0 %v967
    %1323 = vmatpush.bf16.msra.mxu0 %v963
    %1324 = vmatpush.bf16.msra.mxu0 %v959
    %1325 = vmatpush.bf16.msra.mxu0 %v955
    %1326 = vmatpush.bf16.msra.mxu0 %v951
    %1327 = vmatpush.bf16.msra.mxu0 %v947
    %1328 = vmatpush.bf16.msra.mxu0 %v943
    %1329 = vmatmul.bf16.gmra.mxu0 %v111
    %v1330 = vpop.f32.mrf.mxu0
    %v1331 = vadd.f32 %v1317, %v1330
    %v1332 = vpop.f32.mrf.mxu0
    %v1333 = vadd.f32 %v1319, %v1332
    %1334 = vdwg.mxu0
    %1335 = vmatpush.bf16.msra.mxu0 %v1003
    %1336 = vmatpush.bf16.msra.mxu0 %v999
    %1337 = vmatpush.bf16.msra.mxu0 %v995
    %1338 = vmatpush.bf16.msra.mxu0 %v991
    %1339 = vmatpush.bf16.msra.mxu0 %v987
    %1340 = vmatpush.bf16.msra.mxu0 %v983
    %1341 = vmatpush.bf16.msra.mxu0 %v979
    %1342 = vmatpush.bf16.msra.mxu0 %v975
    %1343 = vmatmul.bf16.gmra.mxu0 %v112
    %v1344 = vpop.f32.mrf.mxu0
    %v1345 = vadd.f32 %v1331, %v1344
    %v1346 = vpop.f32.mrf.mxu0
    %v1347 = vadd.f32 %v1333, %v1346
    %1348 = vdwg.mxu0
    %1349 = vmatpush.bf16.msra.mxu0 %v1035
    %1350 = vmatpush.bf16.msra.mxu0 %v1031
    %1351 = vmatpush.bf16.msra.mxu0 %v1027
    %1352 = vmatpush.bf16.msra.mxu0 %v1023
    %1353 = vmatpush.bf16.msra.mxu0 %v1019
    %1354 = vmatpush.bf16.msra.mxu0 %v1015
    %1355 = vmatpush.bf16.msra.mxu0 %v1011
    %1356 = vmatpush.bf16.msra.mxu0 %v1007
    %1357 = vmatmul.bf16.gmra.mxu0 %v113
    %v1358 = vpop.f32.mrf.mxu0
    %v1359 = vadd.f32 %v1345, %v1358
    %v1360 = vpop.f32.mrf.mxu0
    %v1361 = vadd.f32 %v1347, %v1360
    %1362 = vdwg.mxu0
    %1363 = vmatpush.bf16.msra.mxu0 %v1067
    %1364 = vmatpush.bf16.msra.mxu0 %v1063
    %1365 = vmatpush.bf16.msra.mxu0 %v1059
    %1366 = vmatpush.bf16.msra.mxu0 %v1055
    %1367 = vmatpush.bf16.msra.mxu0 %v1051
    %1368 = vmatpush.bf16.msra.mxu0 %v1047
    %1369 = vmatpush.bf16.msra.mxu0 %v1043
    %1370 = vmatpush.bf16.msra.mxu0 %v1039
    %1371 = vmatmul.bf16.gmra.mxu0 %v114
    %v1372 = vpop.f32.mrf.mxu0
    %v1373 = vadd.f32 %v1359, %v1372
    %v1374 = vpop.f32.mrf.mxu0
    %v1375 = vadd.f32 %v1361, %v1374
    %1376 = vdwg.mxu0
    %1377 = vmatpush.bf16.msra.mxu0 %v1099
    %1378 = vmatpush.bf16.msra.mxu0 %v1095
    %1379 = vmatpush.bf16.msra.mxu0 %v1091
    %1380 = vmatpush.bf16.msra.mxu0 %v1087
    %1381 = vmatpush.bf16.msra.mxu0 %v1083
    %1382 = vmatpush.bf16.msra.mxu0 %v1079
    %1383 = vmatpush.bf16.msra.mxu0 %v1075
    %1384 = vmatpush.bf16.msra.mxu0 %v1071
    %1385 = vmatmul.bf16.gmra.mxu0 %v115
    %v1386 = vpop.f32.mrf.mxu0
    %v1387 = vadd.f32 %v1373, %v1386
    %v1388 = vpop.f32.mrf.mxu0
    %v1389 = vadd.f32 %v1375, %v1388
    %1390 = vdwg.mxu0
    %1391 = vmatpush.bf16.msra.mxu0 0
    %1392 = vmatpush.bf16.msra.mxu0 0
    %1393 = vmatpush.bf16.msra.mxu0 0
    %1394 = vmatpush.bf16.msra.mxu0 0
    %1395 = vmatpush.bf16.msra.mxu0 0
    %1396 = vmatpush.bf16.msra.mxu0 0
    %1397 = vmatpush.bf16.msra.mxu0 0
    %1398 = vmatpush.bf16.msra.mxu0 %v1103
    %1399 = vmatmul.bf16.gmra.mxu0 %v1305
    %v1400 = vpop.f32.mrf.mxu0
    %v1401 = vadd.f32 %v1387, %v1400
    %v1402 = vpop.f32.mrf.mxu0
    %v1403 = vadd.f32 %v1389, %v1402
    %1404 = vdwg.mxu0
    %1405 = vmatpush.bf16.msra.mxu0 %v940
    %1406 = vmatpush.bf16.msra.mxu0 %v936
    %1407 = vmatpush.bf16.msra.mxu0 %v932
    %1408 = vmatpush.bf16.msra.mxu0 %v928
    %1409 = vmatpush.bf16.msra.mxu0 %v924
    %1410 = vmatpush.bf16.msra.mxu0 %v920
    %1411 = vmatpush.bf16.msra.mxu0 %v916
    %1412 = vmatpush.bf16.msra.mxu0 %v912
    %1413 = vmatmul.bf16.gmra.mxu0 %v110
    %v1414 = vpop.f32.mrf.mxu0
    %v1415 = vadd.f32 %v316, %v1414
    %v1416 = vpop.f32.mrf.mxu0
    %v1417 = vadd.f32 %v316, %v1416
    %1418 = vdwg.mxu0
    %1419 = vmatpush.bf16.msra.mxu0 %v972
    %1420 = vmatpush.bf16.msra.mxu0 %v968
    %1421 = vmatpush.bf16.msra.mxu0 %v964
    %1422 = vmatpush.bf16.msra.mxu0 %v960
    %1423 = vmatpush.bf16.msra.mxu0 %v956
    %1424 = vmatpush.bf16.msra.mxu0 %v952
    %1425 = vmatpush.bf16.msra.mxu0 %v948
    %1426 = vmatpush.bf16.msra.mxu0 %v944
    %1427 = vmatmul.bf16.gmra.mxu0 %v111
    %v1428 = vpop.f32.mrf.mxu0
    %v1429 = vadd.f32 %v1415, %v1428
    %v1430 = vpop.f32.mrf.mxu0
    %v1431 = vadd.f32 %v1417, %v1430
    %1432 = vdwg.mxu0
    %1433 = vmatpush.bf16.msra.mxu0 %v1004
    %1434 = vmatpush.bf16.msra.mxu0 %v1000
    %1435 = vmatpush.bf16.msra.mxu0 %v996
    %1436 = vmatpush.bf16.msra.mxu0 %v992
    %1437 = vmatpush.bf16.msra.mxu0 %v988
    %1438 = vmatpush.bf16.msra.mxu0 %v984
    %1439 = vmatpush.bf16.msra.mxu0 %v980
    %1440 = vmatpush.bf16.msra.mxu0 %v976
    %1441 = vmatmul.bf16.gmra.mxu0 %v112
    %v1442 = vpop.f32.mrf.mxu0
    %v1443 = vadd.f32 %v1429, %v1442
    %v1444 = vpop.f32.mrf.mxu0
    %v1445 = vadd.f32 %v1431, %v1444
    %1446 = vdwg.mxu0
    %1447 = vmatpush.bf16.msra.mxu0 %v1036
    %1448 = vmatpush.bf16.msra.mxu0 %v1032
    %1449 = vmatpush.bf16.msra.mxu0 %v1028
    %1450 = vmatpush.bf16.msra.mxu0 %v1024
    %1451 = vmatpush.bf16.msra.mxu0 %v1020
    %1452 = vmatpush.bf16.msra.mxu0 %v1016
    %1453 = vmatpush.bf16.msra.mxu0 %v1012
    %1454 = vmatpush.bf16.msra.mxu0 %v1008
    %1455 = vmatmul.bf16.gmra.mxu0 %v113
    %v1456 = vpop.f32.mrf.mxu0
    %v1457 = vadd.f32 %v1443, %v1456
    %v1458 = vpop.f32.mrf.mxu0
    %v1459 = vadd.f32 %v1445, %v1458
    %1460 = vdwg.mxu0
    %1461 = vmatpush.bf16.msra.mxu0 %v1068
    %1462 = vmatpush.bf16.msra.mxu0 %v1064
    %1463 = vmatpush.bf16.msra.mxu0 %v1060
    %1464 = vmatpush.bf16.msra.mxu0 %v1056
    %1465 = vmatpush.bf16.msra.mxu0 %v1052
    %1466 = vmatpush.bf16.msra.mxu0 %v1048
    %1467 = vmatpush.bf16.msra.mxu0 %v1044
    %1468 = vmatpush.bf16.msra.mxu0 %v1040
    %1469 = vmatmul.bf16.gmra.mxu0 %v114
    %v1470 = vpop.f32.mrf.mxu0
    %v1471 = vadd.f32 %v1457, %v1470
    %v1472 = vpop.f32.mrf.mxu0
    %v1473 = vadd.f32 %v1459, %v1472
    %1474 = vdwg.mxu0
    %1475 = vmatpush.bf16.msra.mxu0 %v1100
    %1476 = vmatpush.bf16.msra.mxu0 %v1096
    %1477 = vmatpush.bf16.msra.mxu0 %v1092
    %1478 = vmatpush.bf16.msra.mxu0 %v1088
    %1479 = vmatpush.bf16.msra.mxu0 %v1084
    %1480 = vmatpush.bf16.msra.mxu0 %v1080
    %1481 = vmatpush.bf16.msra.mxu0 %v1076
    %1482 = vmatpush.bf16.msra.mxu0 %v1072
    %1483 = vmatmul.bf16.gmra.mxu0 %v115
    %v1484 = vpop.f32.mrf.mxu0
    %v1485 = vadd.f32 %v1471, %v1484
    %v1486 = vpop.f32.mrf.mxu0
    %v1487 = vadd.f32 %v1473, %v1486
    %1488 = vdwg.mxu0
    %1489 = vmatpush.bf16.msra.mxu0 0
    %1490 = vmatpush.bf16.msra.mxu0 0
    %1491 = vmatpush.bf16.msra.mxu0 0
    %1492 = vmatpush.bf16.msra.mxu0 0
    %1493 = vmatpush.bf16.msra.mxu0 0
    %1494 = vmatpush.bf16.msra.mxu0 0
    %1495 = vmatpush.bf16.msra.mxu0 0
    %1496 = vmatpush.bf16.msra.mxu0 %v1104
    %1497 = vmatmul.bf16.gmra.mxu0 %v1305
    %v1498 = vpop.f32.mrf.mxu0
    %v1499 = vadd.f32 %v1485, %v1498
    %v1500 = vpop.f32.mrf.mxu0
    %v1501 = vadd.f32 %v1487, %v1500
    %1502 = vdwg.mxu0
    %1503 = vmatpush.bf16.msra.mxu0 %v941
    %1504 = vmatpush.bf16.msra.mxu0 %v937
    %1505 = vmatpush.bf16.msra.mxu0 %v933
    %1506 = vmatpush.bf16.msra.mxu0 %v929
    %1507 = vmatpush.bf16.msra.mxu0 %v925
    %1508 = vmatpush.bf16.msra.mxu0 %v921
    %1509 = vmatpush.bf16.msra.mxu0 %v917
    %1510 = vmatpush.bf16.msra.mxu0 %v913
    %1511 = vmatmul.bf16.gmra.mxu0 %v110
    %v1512 = vpop.f32.mrf.mxu0
    %v1513 = vadd.f32 %v317, %v1512
    %v1514 = vpop.f32.mrf.mxu0
    %v1515 = vadd.f32 %v317, %v1514
    %1516 = vdwg.mxu0
    %1517 = vmatpush.bf16.msra.mxu0 %v973
    %1518 = vmatpush.bf16.msra.mxu0 %v969
    %1519 = vmatpush.bf16.msra.mxu0 %v965
    %1520 = vmatpush.bf16.msra.mxu0 %v961
    %1521 = vmatpush.bf16.msra.mxu0 %v957
    %1522 = vmatpush.bf16.msra.mxu0 %v953
    %1523 = vmatpush.bf16.msra.mxu0 %v949
    %1524 = vmatpush.bf16.msra.mxu0 %v945
    %1525 = vmatmul.bf16.gmra.mxu0 %v111
    %v1526 = vpop.f32.mrf.mxu0
    %v1527 = vadd.f32 %v1513, %v1526
    %v1528 = vpop.f32.mrf.mxu0
    %v1529 = vadd.f32 %v1515, %v1528
    %1530 = vdwg.mxu0
    %1531 = vmatpush.bf16.msra.mxu0 %v1005
    %1532 = vmatpush.bf16.msra.mxu0 %v1001
    %1533 = vmatpush.bf16.msra.mxu0 %v997
    %1534 = vmatpush.bf16.msra.mxu0 %v993
    %1535 = vmatpush.bf16.msra.mxu0 %v989
    %1536 = vmatpush.bf16.msra.mxu0 %v985
    %1537 = vmatpush.bf16.msra.mxu0 %v981
    %1538 = vmatpush.bf16.msra.mxu0 %v977
    %1539 = vmatmul.bf16.gmra.mxu0 %v112
    %v1540 = vpop.f32.mrf.mxu0
    %v1541 = vadd.f32 %v1527, %v1540
    %v1542 = vpop.f32.mrf.mxu0
    %v1543 = vadd.f32 %v1529, %v1542
    %1544 = vdwg.mxu0
    %1545 = vmatpush.bf16.msra.mxu0 %v1037
    %1546 = vmatpush.bf16.msra.mxu0 %v1033
    %1547 = vmatpush.bf16.msra.mxu0 %v1029
    %1548 = vmatpush.bf16.msra.mxu0 %v1025
    %1549 = vmatpush.bf16.msra.mxu0 %v1021
    %1550 = vmatpush.bf16.msra.mxu0 %v1017
    %1551 = vmatpush.bf16.msra.mxu0 %v1013
    %1552 = vmatpush.bf16.msra.mxu0 %v1009
    %1553 = vmatmul.bf16.gmra.mxu0 %v113
    %v1554 = vpop.f32.mrf.mxu0
    %v1555 = vadd.f32 %v1541, %v1554
    %v1556 = vpop.f32.mrf.mxu0
    %v1557 = vadd.f32 %v1543, %v1556
    %1558 = vdwg.mxu0
    %1559 = vmatpush.bf16.msra.mxu0 %v1069
    %1560 = vmatpush.bf16.msra.mxu0 %v1065
    %1561 = vmatpush.bf16.msra.mxu0 %v1061
    %1562 = vmatpush.bf16.msra.mxu0 %v1057
    %1563 = vmatpush.bf16.msra.mxu0 %v1053
    %1564 = vmatpush.bf16.msra.mxu0 %v1049
    %1565 = vmatpush.bf16.msra.mxu0 %v1045
    %1566 = vmatpush.bf16.msra.mxu0 %v1041
    %1567 = vmatmul.bf16.gmra.mxu0 %v114
    %v1568 = vpop.f32.mrf.mxu0
    %v1569 = vadd.f32 %v1555, %v1568
    %v1570 = vpop.f32.mrf.mxu0
    %v1571 = vadd.f32 %v1557, %v1570
    %1572 = vdwg.mxu0
    %1573 = vmatpush.bf16.msra.mxu0 %v1101
    %1574 = vmatpush.bf16.msra.mxu0 %v1097
    %1575 = vmatpush.bf16.msra.mxu0 %v1093
    %1576 = vmatpush.bf16.msra.mxu0 %v1089
    %1577 = vmatpush.bf16.msra.mxu0 %v1085
    %1578 = vmatpush.bf16.msra.mxu0 %v1081
    %1579 = vmatpush.bf16.msra.mxu0 %v1077
    %1580 = vmatpush.bf16.msra.mxu0 %v1073
    %1581 = vmatmul.bf16.gmra.mxu0 %v115
    %v1582 = vpop.f32.mrf.mxu0
    %v1583 = vadd.f32 %v1569, %v1582
    %v1584 = vpop.f32.mrf.mxu0
    %v1585 = vadd.f32 %v1571, %v1584
    %1586 = vdwg.mxu0
    %1587 = vmatpush.bf16.msra.mxu0 0
    %1588 = vmatpush.bf16.msra.mxu0 0
    %1589 = vmatpush.bf16.msra.mxu0 0
    %1590 = vmatpush.bf16.msra.mxu0 0
    %1591 = vmatpush.bf16.msra.mxu0 0
    %1592 = vmatpush.bf16.msra.mxu0 0
    %1593 = vmatpush.bf16.msra.mxu0 0
    %1594 = vmatpush.bf16.msra.mxu0 %v1105
    %1595 = vmatmul.bf16.gmra.mxu0 %v1305
    %v1596 = vpop.f32.mrf.mxu0
    %v1597 = vadd.f32 %v1583, %v1596
    %v1598 = vpop.f32.mrf.mxu0
    %v1599 = vadd.f32 %v1585, %v1598
    %1600 = vdwg.mxu0
    %1601 = vmatpush.bf16.msra.mxu0 %v942
    %1602 = vmatpush.bf16.msra.mxu0 %v938
    %1603 = vmatpush.bf16.msra.mxu0 %v934
    %1604 = vmatpush.bf16.msra.mxu0 %v930
    %1605 = vmatpush.bf16.msra.mxu0 %v926
    %1606 = vmatpush.bf16.msra.mxu0 %v922
    %1607 = vmatpush.bf16.msra.mxu0 %v918
    %1608 = vmatpush.bf16.msra.mxu0 %v914
    %1609 = vmatmul.bf16.gmra.mxu0 %v110
    %v1610 = vpop.f32.mrf.mxu0
    %v1611 = vadd.f32 %v318, %v1610
    %v1612 = vpop.f32.mrf.mxu0
    %v1613 = vadd.f32 %v318, %v1612
    %1614 = vdwg.mxu0
    %1615 = vmatpush.bf16.msra.mxu0 %v974
    %1616 = vmatpush.bf16.msra.mxu0 %v970
    %1617 = vmatpush.bf16.msra.mxu0 %v966
    %1618 = vmatpush.bf16.msra.mxu0 %v962
    %1619 = vmatpush.bf16.msra.mxu0 %v958
    %1620 = vmatpush.bf16.msra.mxu0 %v954
    %1621 = vmatpush.bf16.msra.mxu0 %v950
    %1622 = vmatpush.bf16.msra.mxu0 %v946
    %1623 = vmatmul.bf16.gmra.mxu0 %v111
    %v1624 = vpop.f32.mrf.mxu0
    %v1625 = vadd.f32 %v1611, %v1624
    %v1626 = vpop.f32.mrf.mxu0
    %v1627 = vadd.f32 %v1613, %v1626
    %1628 = vdwg.mxu0
    %1629 = vmatpush.bf16.msra.mxu0 %v1006
    %1630 = vmatpush.bf16.msra.mxu0 %v1002
    %1631 = vmatpush.bf16.msra.mxu0 %v998
    %1632 = vmatpush.bf16.msra.mxu0 %v994
    %1633 = vmatpush.bf16.msra.mxu0 %v990
    %1634 = vmatpush.bf16.msra.mxu0 %v986
    %1635 = vmatpush.bf16.msra.mxu0 %v982
    %1636 = vmatpush.bf16.msra.mxu0 %v978
    %1637 = vmatmul.bf16.gmra.mxu0 %v112
    %v1638 = vpop.f32.mrf.mxu0
    %v1639 = vadd.f32 %v1625, %v1638
    %v1640 = vpop.f32.mrf.mxu0
    %v1641 = vadd.f32 %v1627, %v1640
    %1642 = vdwg.mxu0
    %1643 = vmatpush.bf16.msra.mxu0 %v1038
    %1644 = vmatpush.bf16.msra.mxu0 %v1034
    %1645 = vmatpush.bf16.msra.mxu0 %v1030
    %1646 = vmatpush.bf16.msra.mxu0 %v1026
    %1647 = vmatpush.bf16.msra.mxu0 %v1022
    %1648 = vmatpush.bf16.msra.mxu0 %v1018
    %1649 = vmatpush.bf16.msra.mxu0 %v1014
    %1650 = vmatpush.bf16.msra.mxu0 %v1010
    %1651 = vmatmul.bf16.gmra.mxu0 %v113
    %v1652 = vpop.f32.mrf.mxu0
    %v1653 = vadd.f32 %v1639, %v1652
    %v1654 = vpop.f32.mrf.mxu0
    %v1655 = vadd.f32 %v1641, %v1654
    %1656 = vdwg.mxu0
    %1657 = vmatpush.bf16.msra.mxu0 %v1070
    %1658 = vmatpush.bf16.msra.mxu0 %v1066
    %1659 = vmatpush.bf16.msra.mxu0 %v1062
    %1660 = vmatpush.bf16.msra.mxu0 %v1058
    %1661 = vmatpush.bf16.msra.mxu0 %v1054
    %1662 = vmatpush.bf16.msra.mxu0 %v1050
    %1663 = vmatpush.bf16.msra.mxu0 %v1046
    %1664 = vmatpush.bf16.msra.mxu0 %v1042
    %1665 = vmatmul.bf16.gmra.mxu0 %v114
    %v1666 = vpop.f32.mrf.mxu0
    %v1667 = vadd.f32 %v1653, %v1666
    %v1668 = vpop.f32.mrf.mxu0
    %v1669 = vadd.f32 %v1655, %v1668
    %1670 = vdwg.mxu0
    %1671 = vmatpush.bf16.msra.mxu0 %v1102
    %1672 = vmatpush.bf16.msra.mxu0 %v1098
    %1673 = vmatpush.bf16.msra.mxu0 %v1094
    %1674 = vmatpush.bf16.msra.mxu0 %v1090
    %1675 = vmatpush.bf16.msra.mxu0 %v1086
    %1676 = vmatpush.bf16.msra.mxu0 %v1082
    %1677 = vmatpush.bf16.msra.mxu0 %v1078
    %1678 = vmatpush.bf16.msra.mxu0 %v1074
    %1679 = vmatmul.bf16.gmra.mxu0 %v115
    %v1680 = vpop.f32.mrf.mxu0
    %v1681 = vadd.f32 %v1667, %v1680
    %v1682 = vpop.f32.mrf.mxu0
    %v1683 = vadd.f32 %v1669, %v1682
    %1684 = vdwg.mxu0
    %1685 = vmatpush.bf16.msra.mxu0 0
    %1686 = vmatpush.bf16.msra.mxu0 0
    %1687 = vmatpush.bf16.msra.mxu0 0
    %1688 = vmatpush.bf16.msra.mxu0 0
    %1689 = vmatpush.bf16.msra.mxu0 0
    %1690 = vmatpush.bf16.msra.mxu0 0
    %1691 = vmatpush.bf16.msra.mxu0 0
    %1692 = vmatpush.bf16.msra.mxu0 %v1106
    %1693 = vmatmul.bf16.gmra.mxu0 %v1305
    %v1694 = vpop.f32.mrf.mxu0
    %v1695 = vadd.f32 %v1681, %v1694
    %v1696 = vpop.f32.mrf.mxu0
    %v1697 = vadd.f32 %v1683, %v1696
    %1698 = vdwg.mxu0
    %v1699 = vmax.f32 %v1401, 0.0
    %v1700 = vmax.f32 %v1499, 0.0
    %v1701 = vmax.f32 %v1597, 0.0
    %v1702 = vmax.f32 %v1695, 0.0
    %v1703 = vmax.f32 %v1403, 0.0
    %v1704 = vmax.f32 %v1501, 0.0
    %v1705 = vmax.f32 %v1599, 0.0
    %v1706 = vmax.f32 %v1697, 0.0
    %v1707 = vpack.c.bf16 %v1703, %v1699
    %v1708 = vpack.c.bf16 %v1704, %v1700
    %v1709 = vpack.c.bf16 %v1705, %v1701
    %v1710 = vpack.c.bf16 %v1706, %v1702
    %v1711 = vld [vmem:[%s3] sm:$0xff]
    %v1712 = vld [vmem:[%s3 + $0x8] sm:$0xff]
    %v1713 = vld [vmem:[%s3 + $0x10] sm:$0xff]
    %v1714 = vld [vmem:[%s3 + $0x18] sm:$0xff]
    %v1715 = vld [vmem:[%s3 + $0x20] sm:$0xff]
    %v1716 = vld [vmem:[%s3 + $0x28] sm:$0xff]
    %v1717 = vld [vmem:[%s3 + $0x30] sm:$0xff]
    %v1718 = vld [vmem:[%s3 + $0x38] sm:$0xff]
    %v1719 = vld [vmem:[%s3 + $0x40] sm:$0xff]
    %v1720 = vld [vmem:[%s3 + $0x48] sm:$0xff]
    %v1721 = vld [vmem:[%s3 + $0x50] sm:$0xff]
    %v1722 = vld [vmem:[%s3 + $0x58] sm:$0xff]
    %v1723 = vld [vmem:[%s3 + $0x60] sm:$0xff]
    %v1724 = vld [vmem:[%s3 + $0x68] sm:$0xff]
    %v1725 = vld [vmem:[%s3 + $0x70] sm:$0xff]
    %v1726 = vld [vmem:[%s3 + $0x78] sm:$0xff]
    %v1727 = vld [vmem:[%s3 + $0x80] sm:$0xff]
    %v1728 = vld [vmem:[%s3 + $0x88] sm:$0xff]
    %v1729 = vld [vmem:[%s3 + $0x90] sm:$0xff]
    %v1730 = vld [vmem:[%s3 + $0x98] sm:$0xff]
    %v1731 = vld [vmem:[%s3 + $0xa0] sm:$0xff]
    %v1732 = vld [vmem:[%s3 + $0xa8] sm:$0xff]
    %v1733 = vld [vmem:[%s3 + $0xb0] sm:$0xff]
    %v1734 = vld [vmem:[%s3 + $0xb8] sm:$0xff]
    %v1735 = vld [vmem:[%s3 + $0xc0] sm:$0xff]
    %v1736 = vld [vmem:[%s3 + $0xc8] sm:$0xff]
    %v1737 = vld [vmem:[%s3 + $0xd0] sm:$0xff]
    %v1738 = vld [vmem:[%s3 + $0xd8] sm:$0xff]
    %v1739 = vld [vmem:[%s3 + $0xe0] sm:$0xff]
    %v1740 = vld [vmem:[%s3 + $0xe8] sm:$0xff]
    %v1741 = vld [vmem:[%s3 + $0xf0] sm:$0xff]
    %v1742 = vld [vmem:[%s3 + $0xf8] sm:$0xff]
    %v1743 = vld [vmem:[%s3 + $0x100] sm:$0xff]
    %v1744 = vld [vmem:[%s3 + $0x108] sm:$0xff]
    %v1745 = vld [vmem:[%s3 + $0x110] sm:$0xff]
    %v1746 = vld [vmem:[%s3 + $0x118] sm:$0xff]
    %v1747 = vld [vmem:[%s3 + $0x120] sm:$0xff]
    %v1748 = vld [vmem:[%s3 + $0x128] sm:$0xff]
    %v1749 = vld [vmem:[%s3 + $0x130] sm:$0xff]
    %v1750 = vld [vmem:[%s3 + $0x138] sm:$0xff]
    %v1751 = vld [vmem:[%s3 + $0x140] sm:$0xff]
    %v1752 = vld [vmem:[%s3 + $0x148] sm:$0xff]
    %v1753 = vld [vmem:[%s3 + $0x150] sm:$0xff]
    %v1754 = vld [vmem:[%s3 + $0x158] sm:$0xff]
    %v1755 = vld [vmem:[%s3 + $0x160] sm:$0xff]
    %v1756 = vld [vmem:[%s3 + $0x168] sm:$0xff]
    %v1757 = vld [vmem:[%s3 + $0x170] sm:$0xff]
    %v1758 = vld [vmem:[%s3 + $0x178] sm:$0xff]
    %v1759 = vld [vmem:[%s3 + $0x180] sm:$0xff]
    %v1760 = vld [vmem:[%s3 + $0x188] sm:$0xff]
    %v1761 = vld [vmem:[%s3 + $0x190] sm:$0xff]
    %v1762 = vld [vmem:[%s3 + $0x198] sm:$0xff]
    %v1763 = vld [vmem:[%s3 + $0x1a0] sm:$0xff]
    %v1764 = vld [vmem:[%s3 + $0x1a8] sm:$0xff]
    %v1765 = vld [vmem:[%s3 + $0x1b0] sm:$0xff]
    %v1766 = vld [vmem:[%s3 + $0x1b8] sm:$0xff]
    %v1767 = vld [vmem:[%s3 + $0x1c0] sm:$0xff]
    %v1768 = vld [vmem:[%s3 + $0x1c8] sm:$0xff]
    %v1769 = vld [vmem:[%s3 + $0x1d0] sm:$0xff]
    %v1770 = vld [vmem:[%s3 + $0x1d8] sm:$0xff]
    %v1771 = vld [vmem:[%s3 + $0x1e0] sm:$0xff]
    %v1772 = vld [vmem:[%s3 + $0x1e8] sm:$0xff]
    %v1773 = vld [vmem:[%s3 + $0x1f0] sm:$0xff]
    %v1774 = vld [vmem:[%s3 + $0x1f8] sm:$0xff]
    %v1775 = vld [vmem:[%s3 + $0x200] sm:$0xff]
    %v1776 = vld [vmem:[%s3 + $0x208] sm:$0xff]
    %v1777 = vld [vmem:[%s3 + $0x210] sm:$0xff]
    %v1778 = vld [vmem:[%s3 + $0x218] sm:$0xff]
    %v1779 = vld [vmem:[%s3 + $0x220] sm:$0xff]
    %v1780 = vld [vmem:[%s3 + $0x228] sm:$0xff]
    %v1781 = vld [vmem:[%s3 + $0x230] sm:$0xff]
    %v1782 = vld [vmem:[%s3 + $0x238] sm:$0xff]
    %v1783 = vld [vmem:[%s3 + $0x240] sm:$0xff]
    %v1784 = vld [vmem:[%s3 + $0x248] sm:$0xff]
    %v1785 = vld [vmem:[%s3 + $0x250] sm:$0xff]
    %v1786 = vld [vmem:[%s3 + $0x258] sm:$0xff]
    %v1787 = vld [vmem:[%s3 + $0x260] sm:$0xff]
    %v1788 = vld [vmem:[%s3 + $0x268] sm:$0xff]
    %v1789 = vld [vmem:[%s3 + $0x270] sm:$0xff]
    %v1790 = vld [vmem:[%s3 + $0x278] sm:$0xff]
    %v1791 = vld [vmem:[%s3 + $0x280] sm:$0xff]
    %v1792 = vld [vmem:[%s3 + $0x288] sm:$0xff]
    %v1793 = vld [vmem:[%s3 + $0x290] sm:$0xff]
    %v1794 = vld [vmem:[%s3 + $0x298] sm:$0xff]
    %v1795 = vld [vmem:[%s3 + $0x2a0] sm:$0xff]
    %v1796 = vld [vmem:[%s3 + $0x2a8] sm:$0xff]
    %v1797 = vld [vmem:[%s3 + $0x2b0] sm:$0xff]
    %v1798 = vld [vmem:[%s3 + $0x2b8] sm:$0xff]
    %v1799 = vld [vmem:[%s3 + $0x2c0] sm:$0xff]
    %v1800 = vld [vmem:[%s3 + $0x2c8] sm:$0xff]
    %v1801 = vld [vmem:[%s3 + $0x2d0] sm:$0xff]
    %v1802 = vld [vmem:[%s3 + $0x2d8] sm:$0xff]
    %v1803 = vld [vmem:[%s3 + $0x2e0] sm:$0xff]
    %v1804 = vld [vmem:[%s3 + $0x2e8] sm:$0xff]
    %v1805 = vld [vmem:[%s3 + $0x2f0] sm:$0xff]
    %v1806 = vld [vmem:[%s3 + $0x2f8] sm:$0xff]
    %v1807 = vld [vmem:[%s3 + $0x300] sm:$0xff]
    %v1808 = vld [vmem:[%s3 + $0x308] sm:$0xff]
    %v1809 = vld [vmem:[%s3 + $0x310] sm:$0xff]
    %v1810 = vld [vmem:[%s3 + $0x318] sm:$0xff]
    %v1811 = vld [vmem:[%s3 + $0x320] sm:$0xff]
    %v1812 = vld [vmem:[%s3 + $0x328] sm:$0xff]
    %v1813 = vld [vmem:[%s3 + $0x330] sm:$0xff]
    %v1814 = vld [vmem:[%s3 + $0x338] sm:$0xff]
    %v1815 = vld [vmem:[%s3 + $0x340] sm:$0xff]
    %v1816 = vld [vmem:[%s3 + $0x348] sm:$0xff]
    %v1817 = vld [vmem:[%s3 + $0x350] sm:$0xff]
    %v1818 = vld [vmem:[%s3 + $0x358] sm:$0xff]
    %v1819 = vld [vmem:[%s3 + $0x360] sm:$0xff]
    %v1820 = vld [vmem:[%s3 + $0x368] sm:$0xff]
    %v1821 = vld [vmem:[%s3 + $0x370] sm:$0xff]
    %v1822 = vld [vmem:[%s3 + $0x378] sm:$0xff]
    %v1823 = vld [vmem:[%s3 + $0x380] sm:$0xff]
    %v1824 = vld [vmem:[%s3 + $0x388] sm:$0xff]
    %v1825 = vld [vmem:[%s3 + $0x390] sm:$0xff]
    %v1826 = vld [vmem:[%s3 + $0x398] sm:$0xff]
    %v1827 = vld [vmem:[%s3 + $0x3a0] sm:$0xff]
    %v1828 = vld [vmem:[%s3 + $0x3a8] sm:$0xff]
    %v1829 = vld [vmem:[%s3 + $0x3b0] sm:$0xff]
    %v1830 = vld [vmem:[%s3 + $0x3b8] sm:$0xff]
    %v1831 = vld [vmem:[%s3 + $0x3c0] sm:$0xff]
    %v1832 = vld [vmem:[%s3 + $0x3c8] sm:$0xff]
    %v1833 = vld [vmem:[%s3 + $0x3d0] sm:$0xff]
    %v1834 = vld [vmem:[%s3 + $0x3d8] sm:$0xff]
    %v1835 = vld [vmem:[%s3 + $0x3e0] sm:$0xff]
    %v1836 = vld [vmem:[%s3 + $0x3e8] sm:$0xff]
    %v1837 = vld [vmem:[%s3 + $0x3f0] sm:$0xff]
    %v1838 = vld [vmem:[%s3 + $0x3f8] sm:$0xff]
    %v1839 = vld [vmem:[%s4] sm:$0xf]
    %v1841 = vperm.slane %v1839, 0
    %v1842 = vperm.slane %v1839, 1
    %v1843 = vperm.slane %v1839, 2
    %v1844 = vperm.slane %v1839, 3
    %v1977 = vunpack.c.l.b16 %v1711
    %v1978 = vunpack.c.h.b16 %v1711
    %v1979 = vunpack.c.l.b16 %v1712
    %v1980 = vunpack.c.h.b16 %v1712
    %v1981 = vunpack.c.l.b16 %v1713
    %v1982 = vunpack.c.h.b16 %v1713
    %v1983 = vunpack.c.l.b16 %v1714
    %v1984 = vunpack.c.h.b16 %v1714
    %v1985 = vunpack.c.l.b16 %v1715
    %v1986 = vunpack.c.h.b16 %v1715
    %v1987 = vunpack.c.l.b16 %v1716
    %v1988 = vunpack.c.h.b16 %v1716
    %v1989 = vunpack.c.l.b16 %v1717
    %v1990 = vunpack.c.h.b16 %v1717
    %v1991 = vunpack.c.l.b16 %v1718
    %v1992 = vunpack.c.h.b16 %v1718
    %v1993 = vunpack.c.l.b16 %v1719
    %v1994 = vunpack.c.h.b16 %v1719
    %v1995 = vunpack.c.l.b16 %v1720
    %v1996 = vunpack.c.h.b16 %v1720
    %v1997 = vunpack.c.l.b16 %v1721
    %v1998 = vunpack.c.h.b16 %v1721
    %v1999 = vunpack.c.l.b16 %v1722
    %v2000 = vunpack.c.h.b16 %v1722
    %v2001 = vunpack.c.l.b16 %v1723
    %v2002 = vunpack.c.h.b16 %v1723
    %v2003 = vunpack.c.l.b16 %v1724
    %v2004 = vunpack.c.h.b16 %v1724
    %v2005 = vunpack.c.l.b16 %v1725
    %v2006 = vunpack.c.h.b16 %v1725
    %v2007 = vunpack.c.l.b16 %v1726
    %v2008 = vunpack.c.h.b16 %v1726
    %v2009 = vunpack.c.l.b16 %v1727
    %v2010 = vunpack.c.h.b16 %v1727
    %v2011 = vunpack.c.l.b16 %v1728
    %v2012 = vunpack.c.h.b16 %v1728
    %v2013 = vunpack.c.l.b16 %v1729
    %v2014 = vunpack.c.h.b16 %v1729
    %v2015 = vunpack.c.l.b16 %v1730
    %v2016 = vunpack.c.h.b16 %v1730
    %v2017 = vunpack.c.l.b16 %v1731
    %v2018 = vunpack.c.h.b16 %v1731
    %v2019 = vunpack.c.l.b16 %v1732
    %v2020 = vunpack.c.h.b16 %v1732
    %v2021 = vunpack.c.l.b16 %v1733
    %v2022 = vunpack.c.h.b16 %v1733
    %v2023 = vunpack.c.l.b16 %v1734
    %v2024 = vunpack.c.h.b16 %v1734
    %v2025 = vunpack.c.l.b16 %v1735
    %v2026 = vunpack.c.h.b16 %v1735
    %v2027 = vunpack.c.l.b16 %v1736
    %v2028 = vunpack.c.h.b16 %v1736
    %v2029 = vunpack.c.l.b16 %v1737
    %v2030 = vunpack.c.h.b16 %v1737
    %v2031 = vunpack.c.l.b16 %v1738
    %v2032 = vunpack.c.h.b16 %v1738
    %v2033 = vunpack.c.l.b16 %v1739
    %v2034 = vunpack.c.h.b16 %v1739
    %v2035 = vunpack.c.l.b16 %v1740
    %v2036 = vunpack.c.h.b16 %v1740
    %v2037 = vunpack.c.l.b16 %v1741
    %v2038 = vunpack.c.h.b16 %v1741
    %v2039 = vunpack.c.l.b16 %v1742
    %v2040 = vunpack.c.h.b16 %v1742
    %v2041 = vunpack.c.l.b16 %v1743
    %v2042 = vunpack.c.h.b16 %v1743
    %v2043 = vunpack.c.l.b16 %v1744
    %v2044 = vunpack.c.h.b16 %v1744
    %v2045 = vunpack.c.l.b16 %v1745
    %v2046 = vunpack.c.h.b16 %v1745
    %v2047 = vunpack.c.l.b16 %v1746
    %v2048 = vunpack.c.h.b16 %v1746
    %v2049 = vunpack.c.l.b16 %v1747
    %v2050 = vunpack.c.h.b16 %v1747
    %v2051 = vunpack.c.l.b16 %v1748
    %v2052 = vunpack.c.h.b16 %v1748
    %v2053 = vunpack.c.l.b16 %v1749
    %v2054 = vunpack.c.h.b16 %v1749
    %v2055 = vunpack.c.l.b16 %v1750
    %v2056 = vunpack.c.h.b16 %v1750
    %v2057 = vunpack.c.l.b16 %v1751
    %v2058 = vunpack.c.h.b16 %v1751
    %v2059 = vunpack.c.l.b16 %v1752
    %v2060 = vunpack.c.h.b16 %v1752
    %v2061 = vunpack.c.l.b16 %v1753
    %v2062 = vunpack.c.h.b16 %v1753
    %v2063 = vunpack.c.l.b16 %v1754
    %v2064 = vunpack.c.h.b16 %v1754
    %v2065 = vunpack.c.l.b16 %v1755
    %v2066 = vunpack.c.h.b16 %v1755
    %v2067 = vunpack.c.l.b16 %v1756
    %v2068 = vunpack.c.h.b16 %v1756
    %v2069 = vunpack.c.l.b16 %v1757
    %v2070 = vunpack.c.h.b16 %v1757
    %v2071 = vunpack.c.l.b16 %v1758
    %v2072 = vunpack.c.h.b16 %v1758
    %v2073 = vunpack.c.l.b16 %v1759
    %v2074 = vunpack.c.h.b16 %v1759
    %v2075 = vunpack.c.l.b16 %v1760
    %v2076 = vunpack.c.h.b16 %v1760
    %v2077 = vunpack.c.l.b16 %v1761
    %v2078 = vunpack.c.h.b16 %v1761
    %v2079 = vunpack.c.l.b16 %v1762
    %v2080 = vunpack.c.h.b16 %v1762
    %v2081 = vunpack.c.l.b16 %v1763
    %v2082 = vunpack.c.h.b16 %v1763
    %v2083 = vunpack.c.l.b16 %v1764
    %v2084 = vunpack.c.h.b16 %v1764
    %v2085 = vunpack.c.l.b16 %v1765
    %v2086 = vunpack.c.h.b16 %v1765
    %v2087 = vunpack.c.l.b16 %v1766
    %v2088 = vunpack.c.h.b16 %v1766
    %v2089 = vunpack.c.l.b16 %v1767
    %v2090 = vunpack.c.h.b16 %v1767
    %v2091 = vunpack.c.l.b16 %v1768
    %v2092 = vunpack.c.h.b16 %v1768
    %v2093 = vunpack.c.l.b16 %v1769
    %v2094 = vunpack.c.h.b16 %v1769
    %v2095 = vunpack.c.l.b16 %v1770
    %v2096 = vunpack.c.h.b16 %v1770
    %v2097 = vunpack.c.l.b16 %v1771
    %v2098 = vunpack.c.h.b16 %v1771
    %v2099 = vunpack.c.l.b16 %v1772
    %v2100 = vunpack.c.h.b16 %v1772
    %v2101 = vunpack.c.l.b16 %v1773
    %v2102 = vunpack.c.h.b16 %v1773
    %v2103 = vunpack.c.l.b16 %v1774
    %v2104 = vunpack.c.h.b16 %v1774
    %v2105 = vunpack.c.l.b16 %v1775
    %v2106 = vunpack.c.h.b16 %v1775
    %v2107 = vunpack.c.l.b16 %v1776
    %v2108 = vunpack.c.h.b16 %v1776
    %v2109 = vunpack.c.l.b16 %v1777
    %v2110 = vunpack.c.h.b16 %v1777
    %v2111 = vunpack.c.l.b16 %v1778
    %v2112 = vunpack.c.h.b16 %v1778
    %v2113 = vunpack.c.l.b16 %v1779
    %v2114 = vunpack.c.h.b16 %v1779
    %v2115 = vunpack.c.l.b16 %v1780
    %v2116 = vunpack.c.h.b16 %v1780
    %v2117 = vunpack.c.l.b16 %v1781
    %v2118 = vunpack.c.h.b16 %v1781
    %v2119 = vunpack.c.l.b16 %v1782
    %v2120 = vunpack.c.h.b16 %v1782
    %v2121 = vunpack.c.l.b16 %v1783
    %v2122 = vunpack.c.h.b16 %v1783
    %v2123 = vunpack.c.l.b16 %v1784
    %v2124 = vunpack.c.h.b16 %v1784
    %v2125 = vunpack.c.l.b16 %v1785
    %v2126 = vunpack.c.h.b16 %v1785
    %v2127 = vunpack.c.l.b16 %v1786
    %v2128 = vunpack.c.h.b16 %v1786
    %v2129 = vunpack.c.l.b16 %v1787
    %v2130 = vunpack.c.h.b16 %v1787
    %v2131 = vunpack.c.l.b16 %v1788
    %v2132 = vunpack.c.h.b16 %v1788
    %v2133 = vunpack.c.l.b16 %v1789
    %v2134 = vunpack.c.h.b16 %v1789
    %v2135 = vunpack.c.l.b16 %v1790
    %v2136 = vunpack.c.h.b16 %v1790
    %v2137 = vunpack.c.l.b16 %v1791
    %v2138 = vunpack.c.h.b16 %v1791
    %v2139 = vunpack.c.l.b16 %v1792
    %v2140 = vunpack.c.h.b16 %v1792
    %v2141 = vunpack.c.l.b16 %v1793
    %v2142 = vunpack.c.h.b16 %v1793
    %v2143 = vunpack.c.l.b16 %v1794
    %v2144 = vunpack.c.h.b16 %v1794
    %v2145 = vunpack.c.l.b16 %v1795
    %v2146 = vunpack.c.h.b16 %v1795
    %v2147 = vunpack.c.l.b16 %v1796
    %v2148 = vunpack.c.h.b16 %v1796
    %v2149 = vunpack.c.l.b16 %v1797
    %v2150 = vunpack.c.h.b16 %v1797
    %v2151 = vunpack.c.l.b16 %v1798
    %v2152 = vunpack.c.h.b16 %v1798
    %v2153 = vunpack.c.l.b16 %v1799
    %v2154 = vunpack.c.h.b16 %v1799
    %v2155 = vunpack.c.l.b16 %v1800
    %v2156 = vunpack.c.h.b16 %v1800
    %v2157 = vunpack.c.l.b16 %v1801
    %v2158 = vunpack.c.h.b16 %v1801
    %v2159 = vunpack.c.l.b16 %v1802
    %v2160 = vunpack.c.h.b16 %v1802
    %v2161 = vunpack.c.l.b16 %v1803
    %v2162 = vunpack.c.h.b16 %v1803
    %v2163 = vunpack.c.l.b16 %v1804
    %v2164 = vunpack.c.h.b16 %v1804
    %v2165 = vunpack.c.l.b16 %v1805
    %v2166 = vunpack.c.h.b16 %v1805
    %v2167 = vunpack.c.l.b16 %v1806
    %v2168 = vunpack.c.h.b16 %v1806
    %v2169 = vunpack.c.l.b16 %v1807
    %v2170 = vunpack.c.h.b16 %v1807
    %v2171 = vunpack.c.l.b16 %v1808
    %v2172 = vunpack.c.h.b16 %v1808
    %v2173 = vunpack.c.l.b16 %v1809
    %v2174 = vunpack.c.h.b16 %v1809
    %v2175 = vunpack.c.l.b16 %v1810
    %v2176 = vunpack.c.h.b16 %v1810
    %v2177 = vunpack.c.l.b16 %v1811
    %v2178 = vunpack.c.h.b16 %v1811
    %v2179 = vunpack.c.l.b16 %v1812
    %v2180 = vunpack.c.h.b16 %v1812
    %v2181 = vunpack.c.l.b16 %v1813
    %v2182 = vunpack.c.h.b16 %v1813
    %v2183 = vunpack.c.l.b16 %v1814
    %v2184 = vunpack.c.h.b16 %v1814
    %v2185 = vunpack.c.l.b16 %v1815
    %v2186 = vunpack.c.h.b16 %v1815
    %v2187 = vunpack.c.l.b16 %v1816
    %v2188 = vunpack.c.h.b16 %v1816
    %v2189 = vunpack.c.l.b16 %v1817
    %v2190 = vunpack.c.h.b16 %v1817
    %v2191 = vunpack.c.l.b16 %v1818
    %v2192 = vunpack.c.h.b16 %v1818
    %v2193 = vunpack.c.l.b16 %v1819
    %v2194 = vunpack.c.h.b16 %v1819
    %v2195 = vunpack.c.l.b16 %v1820
    %v2196 = vunpack.c.h.b16 %v1820
    %v2197 = vunpack.c.l.b16 %v1821
    %v2198 = vunpack.c.h.b16 %v1821
    %v2199 = vunpack.c.l.b16 %v1822
    %v2200 = vunpack.c.h.b16 %v1822
    %v2201 = vunpack.c.l.b16 %v1823
    %v2202 = vunpack.c.h.b16 %v1823
    %v2203 = vunpack.c.l.b16 %v1824
    %v2204 = vunpack.c.h.b16 %v1824
    %v2205 = vunpack.c.l.b16 %v1825
    %v2206 = vunpack.c.h.b16 %v1825
    %v2207 = vunpack.c.l.b16 %v1826
    %v2208 = vunpack.c.h.b16 %v1826
    %v2209 = vunpack.c.l.b16 %v1827
    %v2210 = vunpack.c.h.b16 %v1827
    %v2211 = vunpack.c.l.b16 %v1828
    %v2212 = vunpack.c.h.b16 %v1828
    %v2213 = vunpack.c.l.b16 %v1829
    %v2214 = vunpack.c.h.b16 %v1829
    %v2215 = vunpack.c.l.b16 %v1830
    %v2216 = vunpack.c.h.b16 %v1830
    %v2217 = vunpack.c.l.b16 %v1831
    %v2218 = vunpack.c.h.b16 %v1831
    %v2219 = vunpack.c.l.b16 %v1832
    %v2220 = vunpack.c.h.b16 %v1832
    %v2221 = vunpack.c.l.b16 %v1833
    %v2222 = vunpack.c.h.b16 %v1833
    %v2223 = vunpack.c.l.b16 %v1834
    %v2224 = vunpack.c.h.b16 %v1834
    %v2225 = vunpack.c.l.b16 %v1835
    %v2226 = vunpack.c.h.b16 %v1835
    %v2227 = vunpack.c.l.b16 %v1836
    %v2228 = vunpack.c.h.b16 %v1836
    %v2229 = vunpack.c.l.b16 %v1837
    %v2230 = vunpack.c.h.b16 %v1837
    %v2231 = vunpack.c.l.b16 %v1838
    %v2232 = vunpack.c.h.b16 %v1838
    %v2233 = vpack.c.b16 %v1981, %v1977
    %v2234 = vpack.c.b16 %v1982, %v1978
    %v2235 = vpack.c.b16 %v1983, %v1979
    %v2236 = vpack.c.b16 %v1984, %v1980
    %v2237 = vpack.c.b16 %v1989, %v1985
    %v2238 = vpack.c.b16 %v1990, %v1986
    %v2239 = vpack.c.b16 %v1991, %v1987
    %v2240 = vpack.c.b16 %v1992, %v1988
    %v2241 = vpack.c.b16 %v1997, %v1993
    %v2242 = vpack.c.b16 %v1998, %v1994
    %v2243 = vpack.c.b16 %v1999, %v1995
    %v2244 = vpack.c.b16 %v2000, %v1996
    %v2245 = vpack.c.b16 %v2005, %v2001
    %v2246 = vpack.c.b16 %v2006, %v2002
    %v2247 = vpack.c.b16 %v2007, %v2003
    %v2248 = vpack.c.b16 %v2008, %v2004
    %v2249 = vpack.c.b16 %v2013, %v2009
    %v2250 = vpack.c.b16 %v2014, %v2010
    %v2251 = vpack.c.b16 %v2015, %v2011
    %v2252 = vpack.c.b16 %v2016, %v2012
    %v2253 = vpack.c.b16 %v2021, %v2017
    %v2254 = vpack.c.b16 %v2022, %v2018
    %v2255 = vpack.c.b16 %v2023, %v2019
    %v2256 = vpack.c.b16 %v2024, %v2020
    %v2257 = vpack.c.b16 %v2029, %v2025
    %v2258 = vpack.c.b16 %v2030, %v2026
    %v2259 = vpack.c.b16 %v2031, %v2027
    %v2260 = vpack.c.b16 %v2032, %v2028
    %v2261 = vpack.c.b16 %v2037, %v2033
    %v2262 = vpack.c.b16 %v2038, %v2034
    %v2263 = vpack.c.b16 %v2039, %v2035
    %v2264 = vpack.c.b16 %v2040, %v2036
    %v2265 = vpack.c.b16 %v2045, %v2041
    %v2266 = vpack.c.b16 %v2046, %v2042
    %v2267 = vpack.c.b16 %v2047, %v2043
    %v2268 = vpack.c.b16 %v2048, %v2044
    %v2269 = vpack.c.b16 %v2053, %v2049
    %v2270 = vpack.c.b16 %v2054, %v2050
    %v2271 = vpack.c.b16 %v2055, %v2051
    %v2272 = vpack.c.b16 %v2056, %v2052
    %v2273 = vpack.c.b16 %v2061, %v2057
    %v2274 = vpack.c.b16 %v2062, %v2058
    %v2275 = vpack.c.b16 %v2063, %v2059
    %v2276 = vpack.c.b16 %v2064, %v2060
    %v2277 = vpack.c.b16 %v2069, %v2065
    %v2278 = vpack.c.b16 %v2070, %v2066
    %v2279 = vpack.c.b16 %v2071, %v2067
    %v2280 = vpack.c.b16 %v2072, %v2068
    %v2281 = vpack.c.b16 %v2077, %v2073
    %v2282 = vpack.c.b16 %v2078, %v2074
    %v2283 = vpack.c.b16 %v2079, %v2075
    %v2284 = vpack.c.b16 %v2080, %v2076
    %v2285 = vpack.c.b16 %v2085, %v2081
    %v2286 = vpack.c.b16 %v2086, %v2082
    %v2287 = vpack.c.b16 %v2087, %v2083
    %v2288 = vpack.c.b16 %v2088, %v2084
    %v2289 = vpack.c.b16 %v2093, %v2089
    %v2290 = vpack.c.b16 %v2094, %v2090
    %v2291 = vpack.c.b16 %v2095, %v2091
    %v2292 = vpack.c.b16 %v2096, %v2092
    %v2293 = vpack.c.b16 %v2101, %v2097
    %v2294 = vpack.c.b16 %v2102, %v2098
    %v2295 = vpack.c.b16 %v2103, %v2099
    %v2296 = vpack.c.b16 %v2104, %v2100
    %v2297 = vpack.c.b16 %v2109, %v2105
    %v2298 = vpack.c.b16 %v2110, %v2106
    %v2299 = vpack.c.b16 %v2111, %v2107
    %v2300 = vpack.c.b16 %v2112, %v2108
    %v2301 = vpack.c.b16 %v2117, %v2113
    %v2302 = vpack.c.b16 %v2118, %v2114
    %v2303 = vpack.c.b16 %v2119, %v2115
    %v2304 = vpack.c.b16 %v2120, %v2116
    %v2305 = vpack.c.b16 %v2125, %v2121
    %v2306 = vpack.c.b16 %v2126, %v2122
    %v2307 = vpack.c.b16 %v2127, %v2123
    %v2308 = vpack.c.b16 %v2128, %v2124
    %v2309 = vpack.c.b16 %v2133, %v2129
    %v2310 = vpack.c.b16 %v2134, %v2130
    %v2311 = vpack.c.b16 %v2135, %v2131
    %v2312 = vpack.c.b16 %v2136, %v2132
    %v2313 = vpack.c.b16 %v2141, %v2137
    %v2314 = vpack.c.b16 %v2142, %v2138
    %v2315 = vpack.c.b16 %v2143, %v2139
    %v2316 = vpack.c.b16 %v2144, %v2140
    %v2317 = vpack.c.b16 %v2149, %v2145
    %v2318 = vpack.c.b16 %v2150, %v2146
    %v2319 = vpack.c.b16 %v2151, %v2147
    %v2320 = vpack.c.b16 %v2152, %v2148
    %v2321 = vpack.c.b16 %v2157, %v2153
    %v2322 = vpack.c.b16 %v2158, %v2154
    %v2323 = vpack.c.b16 %v2159, %v2155
    %v2324 = vpack.c.b16 %v2160, %v2156
    %v2325 = vpack.c.b16 %v2165, %v2161
    %v2326 = vpack.c.b16 %v2166, %v2162
    %v2327 = vpack.c.b16 %v2167, %v2163
    %v2328 = vpack.c.b16 %v2168, %v2164
    %v2329 = vpack.c.b16 %v2173, %v2169
    %v2330 = vpack.c.b16 %v2174, %v2170
    %v2331 = vpack.c.b16 %v2175, %v2171
    %v2332 = vpack.c.b16 %v2176, %v2172
    %v2333 = vpack.c.b16 %v2181, %v2177
    %v2334 = vpack.c.b16 %v2182, %v2178
    %v2335 = vpack.c.b16 %v2183, %v2179
    %v2336 = vpack.c.b16 %v2184, %v2180
    %v2337 = vpack.c.b16 %v2189, %v2185
    %v2338 = vpack.c.b16 %v2190, %v2186
    %v2339 = vpack.c.b16 %v2191, %v2187
    %v2340 = vpack.c.b16 %v2192, %v2188
    %v2341 = vpack.c.b16 %v2197, %v2193
    %v2342 = vpack.c.b16 %v2198, %v2194
    %v2343 = vpack.c.b16 %v2199, %v2195
    %v2344 = vpack.c.b16 %v2200, %v2196
    %v2345 = vpack.c.b16 %v2205, %v2201
    %v2346 = vpack.c.b16 %v2206, %v2202
    %v2347 = vpack.c.b16 %v2207, %v2203
    %v2348 = vpack.c.b16 %v2208, %v2204
    %v2349 = vpack.c.b16 %v2213, %v2209
    %v2350 = vpack.c.b16 %v2214, %v2210
    %v2351 = vpack.c.b16 %v2215, %v2211
    %v2352 = vpack.c.b16 %v2216, %v2212
    %v2353 = vpack.c.b16 %v2221, %v2217
    %v2354 = vpack.c.b16 %v2222, %v2218
    %v2355 = vpack.c.b16 %v2223, %v2219
    %v2356 = vpack.c.b16 %v2224, %v2220
    %v2357 = vpack.c.b16 %v2229, %v2225
    %v2358 = vpack.c.b16 %v2230, %v2226
    %v2359 = vpack.c.b16 %v2231, %v2227
    %v2360 = vpack.c.b16 %v2232, %v2228
    %2489 = vmatpush.bf16.msra.mxu0 %v2261
    %2490 = vmatpush.bf16.msra.mxu0 %v2257
    %2491 = vmatpush.bf16.msra.mxu0 %v2253
    %2492 = vmatpush.bf16.msra.mxu0 %v2249
    %2493 = vmatpush.bf16.msra.mxu0 %v2245
    %2494 = vmatpush.bf16.msra.mxu0 %v2241
    %2495 = vmatpush.bf16.msra.mxu0 %v2237
    %2496 = vmatpush.bf16.msra.mxu0 %v2233
    %2497 = vmatmul.bf16.gmra.mxu0 %v1707
    %v2498 = vpop.f32.mrf.mxu0
    %v2499 = vadd.f32 %v1841, %v2498
    %v2500 = vpop.f32.mrf.mxu0
    %v2501 = vadd.f32 %v1841, %v2500
    %2502 = vdwg.mxu0
    %2503 = vmatpush.bf16.msra.mxu0 %v2293
    %2504 = vmatpush.bf16.msra.mxu0 %v2289
    %2505 = vmatpush.bf16.msra.mxu0 %v2285
    %2506 = vmatpush.bf16.msra.mxu0 %v2281
    %2507 = vmatpush.bf16.msra.mxu0 %v2277
    %2508 = vmatpush.bf16.msra.mxu0 %v2273
    %2509 = vmatpush.bf16.msra.mxu0 %v2269
    %2510 = vmatpush.bf16.msra.mxu0 %v2265
    %2511 = vmatmul.bf16.gmra.mxu0 %v1708
    %v2512 = vpop.f32.mrf.mxu0
    %v2513 = vadd.f32 %v2499, %v2512
    %v2514 = vpop.f32.mrf.mxu0
    %v2515 = vadd.f32 %v2501, %v2514
    %2516 = vdwg.mxu0
    %2517 = vmatpush.bf16.msra.mxu0 %v2325
    %2518 = vmatpush.bf16.msra.mxu0 %v2321
    %2519 = vmatpush.bf16.msra.mxu0 %v2317
    %2520 = vmatpush.bf16.msra.mxu0 %v2313
    %2521 = vmatpush.bf16.msra.mxu0 %v2309
    %2522 = vmatpush.bf16.msra.mxu0 %v2305
    %2523 = vmatpush.bf16.msra.mxu0 %v2301
    %2524 = vmatpush.bf16.msra.mxu0 %v2297
    %2525 = vmatmul.bf16.gmra.mxu0 %v1709
    %v2526 = vpop.f32.mrf.mxu0
    %v2527 = vadd.f32 %v2513, %v2526
    %v2528 = vpop.f32.mrf.mxu0
    %v2529 = vadd.f32 %v2515, %v2528
    %2530 = vdwg.mxu0
    %2531 = vmatpush.bf16.msra.mxu0 %v2357
    %2532 = vmatpush.bf16.msra.mxu0 %v2353
    %2533 = vmatpush.bf16.msra.mxu0 %v2349
    %2534 = vmatpush.bf16.msra.mxu0 %v2345
    %2535 = vmatpush.bf16.msra.mxu0 %v2341
    %2536 = vmatpush.bf16.msra.mxu0 %v2337
    %2537 = vmatpush.bf16.msra.mxu0 %v2333
    %2538 = vmatpush.bf16.msra.mxu0 %v2329
    %2539 = vmatmul.bf16.gmra.mxu0 %v1710
    %v2540 = vpop.f32.mrf.mxu0
    %v2541 = vadd.f32 %v2527, %v2540
    %v2542 = vpop.f32.mrf.mxu0
    %v2543 = vadd.f32 %v2529, %v2542
    %2544 = vdwg.mxu0
    %2545 = vmatpush.bf16.msra.mxu0 %v2262
    %2546 = vmatpush.bf16.msra.mxu0 %v2258
    %2547 = vmatpush.bf16.msra.mxu0 %v2254
    %2548 = vmatpush.bf16.msra.mxu0 %v2250
    %2549 = vmatpush.bf16.msra.mxu0 %v2246
    %2550 = vmatpush.bf16.msra.mxu0 %v2242
    %2551 = vmatpush.bf16.msra.mxu0 %v2238
    %2552 = vmatpush.bf16.msra.mxu0 %v2234
    %2553 = vmatmul.bf16.gmra.mxu0 %v1707
    %v2554 = vpop.f32.mrf.mxu0
    %v2555 = vadd.f32 %v1842, %v2554
    %v2556 = vpop.f32.mrf.mxu0
    %v2557 = vadd.f32 %v1842, %v2556
    %2558 = vdwg.mxu0
    %2559 = vmatpush.bf16.msra.mxu0 %v2294
    %2560 = vmatpush.bf16.msra.mxu0 %v2290
    %2561 = vmatpush.bf16.msra.mxu0 %v2286
    %2562 = vmatpush.bf16.msra.mxu0 %v2282
    %2563 = vmatpush.bf16.msra.mxu0 %v2278
    %2564 = vmatpush.bf16.msra.mxu0 %v2274
    %2565 = vmatpush.bf16.msra.mxu0 %v2270
    %2566 = vmatpush.bf16.msra.mxu0 %v2266
    %2567 = vmatmul.bf16.gmra.mxu0 %v1708
    %v2568 = vpop.f32.mrf.mxu0
    %v2569 = vadd.f32 %v2555, %v2568
    %v2570 = vpop.f32.mrf.mxu0
    %v2571 = vadd.f32 %v2557, %v2570
    %2572 = vdwg.mxu0
    %2573 = vmatpush.bf16.msra.mxu0 %v2326
    %2574 = vmatpush.bf16.msra.mxu0 %v2322
    %2575 = vmatpush.bf16.msra.mxu0 %v2318
    %2576 = vmatpush.bf16.msra.mxu0 %v2314
    %2577 = vmatpush.bf16.msra.mxu0 %v2310
    %2578 = vmatpush.bf16.msra.mxu0 %v2306
    %2579 = vmatpush.bf16.msra.mxu0 %v2302
    %2580 = vmatpush.bf16.msra.mxu0 %v2298
    %2581 = vmatmul.bf16.gmra.mxu0 %v1709
    %v2582 = vpop.f32.mrf.mxu0
    %v2583 = vadd.f32 %v2569, %v2582
    %v2584 = vpop.f32.mrf.mxu0
    %v2585 = vadd.f32 %v2571, %v2584
    %2586 = vdwg.mxu0
    %2587 = vmatpush.bf16.msra.mxu0 %v2358
    %2588 = vmatpush.bf16.msra.mxu0 %v2354
    %2589 = vmatpush.bf16.msra.mxu0 %v2350
    %2590 = vmatpush.bf16.msra.mxu0 %v2346
    %2591 = vmatpush.bf16.msra.mxu0 %v2342
    %2592 = vmatpush.bf16.msra.mxu0 %v2338
    %2593 = vmatpush.bf16.msra.mxu0 %v2334
    %2594 = vmatpush.bf16.msra.mxu0 %v2330
    %2595 = vmatmul.bf16.gmra.mxu0 %v1710
    %v2596 = vpop.f32.mrf.mxu0
    %v2597 = vadd.f32 %v2583, %v2596
    %v2598 = vpop.f32.mrf.mxu0
    %v2599 = vadd.f32 %v2585, %v2598
    %2600 = vdwg.mxu0
    %2601 = vmatpush.bf16.msra.mxu0 %v2263
    %2602 = vmatpush.bf16.msra.mxu0 %v2259
    %2603 = vmatpush.bf16.msra.mxu0 %v2255
    %2604 = vmatpush.bf16.msra.mxu0 %v2251
    %2605 = vmatpush.bf16.msra.mxu0 %v2247
    %2606 = vmatpush.bf16.msra.mxu0 %v2243
    %2607 = vmatpush.bf16.msra.mxu0 %v2239
    %2608 = vmatpush.bf16.msra.mxu0 %v2235
    %2609 = vmatmul.bf16.gmra.mxu0 %v1707
    %v2610 = vpop.f32.mrf.mxu0
    %v2611 = vadd.f32 %v1843, %v2610
    %v2612 = vpop.f32.mrf.mxu0
    %v2613 = vadd.f32 %v1843, %v2612
    %2614 = vdwg.mxu0
    %2615 = vmatpush.bf16.msra.mxu0 %v2295
    %2616 = vmatpush.bf16.msra.mxu0 %v2291
    %2617 = vmatpush.bf16.msra.mxu0 %v2287
    %2618 = vmatpush.bf16.msra.mxu0 %v2283
    %2619 = vmatpush.bf16.msra.mxu0 %v2279
    %2620 = vmatpush.bf16.msra.mxu0 %v2275
    %2621 = vmatpush.bf16.msra.mxu0 %v2271
    %2622 = vmatpush.bf16.msra.mxu0 %v2267
    %2623 = vmatmul.bf16.gmra.mxu0 %v1708
    %v2624 = vpop.f32.mrf.mxu0
    %v2625 = vadd.f32 %v2611, %v2624
    %v2626 = vpop.f32.mrf.mxu0
    %v2627 = vadd.f32 %v2613, %v2626
    %2628 = vdwg.mxu0
    %2629 = vmatpush.bf16.msra.mxu0 %v2327
    %2630 = vmatpush.bf16.msra.mxu0 %v2323
    %2631 = vmatpush.bf16.msra.mxu0 %v2319
    %2632 = vmatpush.bf16.msra.mxu0 %v2315
    %2633 = vmatpush.bf16.msra.mxu0 %v2311
    %2634 = vmatpush.bf16.msra.mxu0 %v2307
    %2635 = vmatpush.bf16.msra.mxu0 %v2303
    %2636 = vmatpush.bf16.msra.mxu0 %v2299
    %2637 = vmatmul.bf16.gmra.mxu0 %v1709
    %v2638 = vpop.f32.mrf.mxu0
    %v2639 = vadd.f32 %v2625, %v2638
    %v2640 = vpop.f32.mrf.mxu0
    %v2641 = vadd.f32 %v2627, %v2640
    %2642 = vdwg.mxu0
    %2643 = vmatpush.bf16.msra.mxu0 %v2359
    %2644 = vmatpush.bf16.msra.mxu0 %v2355
    %2645 = vmatpush.bf16.msra.mxu0 %v2351
    %2646 = vmatpush.bf16.msra.mxu0 %v2347
    %2647 = vmatpush.bf16.msra.mxu0 %v2343
    %2648 = vmatpush.bf16.msra.mxu0 %v2339
    %2649 = vmatpush.bf16.msra.mxu0 %v2335
    %2650 = vmatpush.bf16.msra.mxu0 %v2331
    %2651 = vmatmul.bf16.gmra.mxu0 %v1710
    %v2652 = vpop.f32.mrf.mxu0
    %v2653 = vadd.f32 %v2639, %v2652
    %v2654 = vpop.f32.mrf.mxu0
    %v2655 = vadd.f32 %v2641, %v2654
    %2656 = vdwg.mxu0
    %2657 = vmatpush.bf16.msra.mxu0 %v2264
    %2658 = vmatpush.bf16.msra.mxu0 %v2260
    %2659 = vmatpush.bf16.msra.mxu0 %v2256
    %2660 = vmatpush.bf16.msra.mxu0 %v2252
    %2661 = vmatpush.bf16.msra.mxu0 %v2248
    %2662 = vmatpush.bf16.msra.mxu0 %v2244
    %2663 = vmatpush.bf16.msra.mxu0 %v2240
    %2664 = vmatpush.bf16.msra.mxu0 %v2236
    %2665 = vmatmul.bf16.gmra.mxu0 %v1707
    %v2666 = vpop.f32.mrf.mxu0
    %v2667 = vadd.f32 %v1844, %v2666
    %v2668 = vpop.f32.mrf.mxu0
    %v2669 = vadd.f32 %v1844, %v2668
    %2670 = vdwg.mxu0
    %2671 = vmatpush.bf16.msra.mxu0 %v2296
    %2672 = vmatpush.bf16.msra.mxu0 %v2292
    %2673 = vmatpush.bf16.msra.mxu0 %v2288
    %2674 = vmatpush.bf16.msra.mxu0 %v2284
    %2675 = vmatpush.bf16.msra.mxu0 %v2280
    %2676 = vmatpush.bf16.msra.mxu0 %v2276
    %2677 = vmatpush.bf16.msra.mxu0 %v2272
    %2678 = vmatpush.bf16.msra.mxu0 %v2268
    %2679 = vmatmul.bf16.gmra.mxu0 %v1708
    %v2680 = vpop.f32.mrf.mxu0
    %v2681 = vadd.f32 %v2667, %v2680
    %v2682 = vpop.f32.mrf.mxu0
    %v2683 = vadd.f32 %v2669, %v2682
    %2684 = vdwg.mxu0
    %2685 = vmatpush.bf16.msra.mxu0 %v2328
    %2686 = vmatpush.bf16.msra.mxu0 %v2324
    %2687 = vmatpush.bf16.msra.mxu0 %v2320
    %2688 = vmatpush.bf16.msra.mxu0 %v2316
    %2689 = vmatpush.bf16.msra.mxu0 %v2312
    %2690 = vmatpush.bf16.msra.mxu0 %v2308
    %2691 = vmatpush.bf16.msra.mxu0 %v2304
    %2692 = vmatpush.bf16.msra.mxu0 %v2300
    %2693 = vmatmul.bf16.gmra.mxu0 %v1709
    %v2694 = vpop.f32.mrf.mxu0
    %v2695 = vadd.f32 %v2681, %v2694
    %v2696 = vpop.f32.mrf.mxu0
    %v2697 = vadd.f32 %v2683, %v2696
    %2698 = vdwg.mxu0
    %2699 = vmatpush.bf16.msra.mxu0 %v2360
    %2700 = vmatpush.bf16.msra.mxu0 %v2356
    %2701 = vmatpush.bf16.msra.mxu0 %v2352
    %2702 = vmatpush.bf16.msra.mxu0 %v2348
    %2703 = vmatpush.bf16.msra.mxu0 %v2344
    %2704 = vmatpush.bf16.msra.mxu0 %v2340
    %2705 = vmatpush.bf16.msra.mxu0 %v2336
    %2706 = vmatpush.bf16.msra.mxu0 %v2332
    %2707 = vmatmul.bf16.gmra.mxu0 %v1710
    %v2708 = vpop.f32.mrf.mxu0
    %v2709 = vadd.f32 %v2695, %v2708
    %v2710 = vpop.f32.mrf.mxu0
    %v2711 = vadd.f32 %v2697, %v2710
    %2712 = vdwg.mxu0
    %v2713 = vmax.f32 %v2541, 0.0
    %v2714 = vmax.f32 %v2597, 0.0
    %v2715 = vmax.f32 %v2653, 0.0
    %v2716 = vmax.f32 %v2709, 0.0
    %v2717 = vmax.f32 %v2543, 0.0
    %v2718 = vmax.f32 %v2599, 0.0
    %v2719 = vmax.f32 %v2655, 0.0
    %v2720 = vmax.f32 %v2711, 0.0
    %v2721 = vpack.c.bf16 %v2717, %v2713
    %v2722 = vpack.c.bf16 %v2718, %v2714
    %v2723 = vpack.c.bf16 %v2719, %v2715
    %v2724 = vpack.c.bf16 %v2720, %v2716
    %v2725 = vld [vmem:[%s5] sm:$0xf]
    %v2726 = vld [vmem:[%s5 + $0x4] sm:$0xf]
    %v2727 = vld [vmem:[%s5 + $0x8] sm:$0xf]
    %v2728 = vld [vmem:[%s5 + $0xc] sm:$0xf]
    %v2729 = vld [vmem:[%s5 + $0x10] sm:$0xf]
    %v2730 = vld [vmem:[%s5 + $0x14] sm:$0xf]
    %v2731 = vld [vmem:[%s5 + $0x18] sm:$0xf]
    %v2732 = vld [vmem:[%s5 + $0x1c] sm:$0xf]
    %v2733 = vld [vmem:[%s5 + $0x20] sm:$0xf]
    %v2734 = vld [vmem:[%s5 + $0x24] sm:$0xf]
    %v2735 = vld [vmem:[%s5 + $0x28] sm:$0xf]
    %v2736 = vld [vmem:[%s5 + $0x2c] sm:$0xf]
    %v2737 = vld [vmem:[%s5 + $0x30] sm:$0xf]
    %v2738 = vld [vmem:[%s5 + $0x34] sm:$0xf]
    %v2739 = vld [vmem:[%s5 + $0x38] sm:$0xf]
    %v2740 = vld [vmem:[%s5 + $0x3c] sm:$0xf]
    %v2741 = vld [vmem:[%s5 + $0x40] sm:$0xf]
    %v2742 = vld [vmem:[%s5 + $0x44] sm:$0xf]
    %v2743 = vld [vmem:[%s5 + $0x48] sm:$0xf]
    %v2744 = vld [vmem:[%s5 + $0x4c] sm:$0xf]
    %v2745 = vld [vmem:[%s5 + $0x50] sm:$0xf]
    %v2746 = vld [vmem:[%s5 + $0x54] sm:$0xf]
    %v2747 = vld [vmem:[%s5 + $0x58] sm:$0xf]
    %v2748 = vld [vmem:[%s5 + $0x5c] sm:$0xf]
    %v2749 = vld [vmem:[%s5 + $0x60] sm:$0xf]
    %v2750 = vld [vmem:[%s5 + $0x64] sm:$0xf]
    %v2751 = vld [vmem:[%s5 + $0x68] sm:$0xf]
    %v2752 = vld [vmem:[%s5 + $0x6c] sm:$0xf]
    %v2753 = vld [vmem:[%s5 + $0x70] sm:$0xf]
    %v2754 = vld [vmem:[%s5 + $0x74] sm:$0xf]
    %v2755 = vld [vmem:[%s5 + $0x78] sm:$0xf]
    %v2756 = vld [vmem:[%s5 + $0x7c] sm:$0xf]
    %v2757 = vld [vmem:[%s5 + $0x80] sm:$0xf]
    %v2758 = vld [vmem:[%s5 + $0x84] sm:$0xf]
    %v2759 = vld [vmem:[%s5 + $0x88] sm:$0xf]
    %v2760 = vld [vmem:[%s5 + $0x8c] sm:$0xf]
    %v2761 = vld [vmem:[%s5 + $0x90] sm:$0xf]
    %v2762 = vld [vmem:[%s5 + $0x94] sm:$0xf]
    %v2763 = vld [vmem:[%s5 + $0x98] sm:$0xf]
    %v2764 = vld [vmem:[%s5 + $0x9c] sm:$0xf]
    %v2765 = vld [vmem:[%s5 + $0xa0] sm:$0xf]
    %v2766 = vld [vmem:[%s5 + $0xa4] sm:$0xf]
    %v2767 = vld [vmem:[%s5 + $0xa8] sm:$0xf]
    %v2768 = vld [vmem:[%s5 + $0xac] sm:$0xf]
    %v2769 = vld [vmem:[%s5 + $0xb0] sm:$0xf]
    %v2770 = vld [vmem:[%s5 + $0xb4] sm:$0xf]
    %v2771 = vld [vmem:[%s5 + $0xb8] sm:$0xf]
    %v2772 = vld [vmem:[%s5 + $0xbc] sm:$0xf]
    %v2773 = vld [vmem:[%s5 + $0xc0] sm:$0xf]
    %v2774 = vld [vmem:[%s5 + $0xc4] sm:$0xf]
    %v2775 = vld [vmem:[%s5 + $0xc8] sm:$0xf]
    %v2776 = vld [vmem:[%s5 + $0xcc] sm:$0xf]
    %v2777 = vld [vmem:[%s5 + $0xd0] sm:$0xf]
    %v2778 = vld [vmem:[%s5 + $0xd4] sm:$0xf]
    %v2779 = vld [vmem:[%s5 + $0xd8] sm:$0xf]
    %v2780 = vld [vmem:[%s5 + $0xdc] sm:$0xf]
    %v2781 = vld [vmem:[%s5 + $0xe0] sm:$0xf]
    %v2782 = vld [vmem:[%s5 + $0xe4] sm:$0xf]
    %v2783 = vld [vmem:[%s5 + $0xe8] sm:$0xf]
    %v2784 = vld [vmem:[%s5 + $0xec] sm:$0xf]
    %v2785 = vld [vmem:[%s5 + $0xf0] sm:$0xf]
    %v2786 = vld [vmem:[%s5 + $0xf4] sm:$0xf]
    %v2787 = vld [vmem:[%s5 + $0xf8] sm:$0xf]
    %v2788 = vld [vmem:[%s5 + $0xfc] sm:$0xf]
    %v2789 = vld [vmem:[%s6] sm:$0x1]
    %v2791 = vperm.slane %v2789, 0
    %v2857 = vunpack.c.l.b16 %v2725
    %v2858 = vunpack.c.l.b16 %v2726
    %v2859 = vunpack.c.l.b16 %v2727
    %v2860 = vunpack.c.l.b16 %v2728
    %v2861 = vunpack.c.l.b16 %v2729
    %v2862 = vunpack.c.l.b16 %v2730
    %v2863 = vunpack.c.l.b16 %v2731
    %v2864 = vunpack.c.l.b16 %v2732
    %v2865 = vunpack.c.l.b16 %v2733
    %v2866 = vunpack.c.l.b16 %v2734
    %v2867 = vunpack.c.l.b16 %v2735
    %v2868 = vunpack.c.l.b16 %v2736
    %v2869 = vunpack.c.l.b16 %v2737
    %v2870 = vunpack.c.l.b16 %v2738
    %v2871 = vunpack.c.l.b16 %v2739
    %v2872 = vunpack.c.l.b16 %v2740
    %v2873 = vunpack.c.l.b16 %v2741
    %v2874 = vunpack.c.l.b16 %v2742
    %v2875 = vunpack.c.l.b16 %v2743
    %v2876 = vunpack.c.l.b16 %v2744
    %v2877 = vunpack.c.l.b16 %v2745
    %v2878 = vunpack.c.l.b16 %v2746
    %v2879 = vunpack.c.l.b16 %v2747
    %v2880 = vunpack.c.l.b16 %v2748
    %v2881 = vunpack.c.l.b16 %v2749
    %v2882 = vunpack.c.l.b16 %v2750
    %v2883 = vunpack.c.l.b16 %v2751
    %v2884 = vunpack.c.l.b16 %v2752
    %v2885 = vunpack.c.l.b16 %v2753
    %v2886 = vunpack.c.l.b16 %v2754
    %v2887 = vunpack.c.l.b16 %v2755
    %v2888 = vunpack.c.l.b16 %v2756
    %v2889 = vunpack.c.l.b16 %v2757
    %v2890 = vunpack.c.l.b16 %v2758
    %v2891 = vunpack.c.l.b16 %v2759
    %v2892 = vunpack.c.l.b16 %v2760
    %v2893 = vunpack.c.l.b16 %v2761
    %v2894 = vunpack.c.l.b16 %v2762
    %v2895 = vunpack.c.l.b16 %v2763
    %v2896 = vunpack.c.l.b16 %v2764
    %v2897 = vunpack.c.l.b16 %v2765
    %v2898 = vunpack.c.l.b16 %v2766
    %v2899 = vunpack.c.l.b16 %v2767
    %v2900 = vunpack.c.l.b16 %v2768
    %v2901 = vunpack.c.l.b16 %v2769
    %v2902 = vunpack.c.l.b16 %v2770
    %v2903 = vunpack.c.l.b16 %v2771
    %v2904 = vunpack.c.l.b16 %v2772
    %v2905 = vunpack.c.l.b16 %v2773
    %v2906 = vunpack.c.l.b16 %v2774
    %v2907 = vunpack.c.l.b16 %v2775
    %v2908 = vunpack.c.l.b16 %v2776
    %v2909 = vunpack.c.l.b16 %v2777
    %v2910 = vunpack.c.l.b16 %v2778
    %v2911 = vunpack.c.l.b16 %v2779
    %v2912 = vunpack.c.l.b16 %v2780
    %v2913 = vunpack.c.l.b16 %v2781
    %v2914 = vunpack.c.l.b16 %v2782
    %v2915 = vunpack.c.l.b16 %v2783
    %v2916 = vunpack.c.l.b16 %v2784
    %v2917 = vunpack.c.l.b16 %v2785
    %v2918 = vunpack.c.l.b16 %v2786
    %v2919 = vunpack.c.l.b16 %v2787
    %v2920 = vunpack.c.l.b16 %v2788
    %v2921 = vpack.c.b16 %v2858, %v2857
    %v2922 = vpack.c.b16 %v2860, %v2859
    %v2923 = vpack.c.b16 %v2862, %v2861
    %v2924 = vpack.c.b16 %v2864, %v2863
    %v2925 = vpack.c.b16 %v2866, %v2865
    %v2926 = vpack.c.b16 %v2868, %v2867
    %v2927 = vpack.c.b16 %v2870, %v2869
    %v2928 = vpack.c.b16 %v2872, %v2871
    %v2929 = vpack.c.b16 %v2874, %v2873
    %v2930 = vpack.c.b16 %v2876, %v2875
    %v2931 = vpack.c.b16 %v2878, %v2877
    %v2932 = vpack.c.b16 %v2880, %v2879
    %v2933 = vpack.c.b16 %v2882, %v2881
    %v2934 = vpack.c.b16 %v2884, %v2883
    %v2935 = vpack.c.b16 %v2886, %v2885
    %v2936 = vpack.c.b16 %v2888, %v2887
    %v2937 = vpack.c.b16 %v2890, %v2889
    %v2938 = vpack.c.b16 %v2892, %v2891
    %v2939 = vpack.c.b16 %v2894, %v2893
    %v2940 = vpack.c.b16 %v2896, %v2895
    %v2941 = vpack.c.b16 %v2898, %v2897
    %v2942 = vpack.c.b16 %v2900, %v2899
    %v2943 = vpack.c.b16 %v2902, %v2901
    %v2944 = vpack.c.b16 %v2904, %v2903
    %v2945 = vpack.c.b16 %v2906, %v2905
    %v2946 = vpack.c.b16 %v2908, %v2907
    %v2947 = vpack.c.b16 %v2910, %v2909
    %v2948 = vpack.c.b16 %v2912, %v2911
    %v2949 = vpack.c.b16 %v2914, %v2913
    %v2950 = vpack.c.b16 %v2916, %v2915
    %v2951 = vpack.c.b16 %v2918, %v2917
    %v2952 = vpack.c.b16 %v2920, %v2919
    %2985 = vmatpush.bf16.msra.mxu0 %v2928
    %2986 = vmatpush.bf16.msra.mxu0 %v2927
    %2987 = vmatpush.bf16.msra.mxu0 %v2926
    %2988 = vmatpush.bf16.msra.mxu0 %v2925
    %2989 = vmatpush.bf16.msra.mxu0 %v2924
    %2990 = vmatpush.bf16.msra.mxu0 %v2923
    %2991 = vmatpush.bf16.msra.mxu0 %v2922
    %2992 = vmatpush.bf16.msra.mxu0 %v2921
    %2993 = vmatmul.bf16.gmra.mxu0 %v2721
    %v2994 = vpop.f32.mrf.mxu0
    %v2995 = vadd.f32 %v2791, %v2994
    %v2996 = vpop.f32.mrf.mxu0
    %v2997 = vadd.f32 %v2791, %v2996
    %2998 = vdwg.mxu0
    %2999 = vmatpush.bf16.msra.mxu0 %v2936
    %3000 = vmatpush.bf16.msra.mxu0 %v2935
    %3001 = vmatpush.bf16.msra.mxu0 %v2934
    %3002 = vmatpush.bf16.msra.mxu0 %v2933
    %3003 = vmatpush.bf16.msra.mxu0 %v2932
    %3004 = vmatpush.bf16.msra.mxu0 %v2931
    %3005 = vmatpush.bf16.msra.mxu0 %v2930
    %3006 = vmatpush.bf16.msra.mxu0 %v2929
    %3007 = vmatmul.bf16.gmra.mxu0 %v2722
    %v3008 = vpop.f32.mrf.mxu0
    %v3009 = vadd.f32 %v2995, %v3008
    %v3010 = vpop.f32.mrf.mxu0
    %v3011 = vadd.f32 %v2997, %v3010
    %3012 = vdwg.mxu0
    %3013 = vmatpush.bf16.msra.mxu0 %v2944
    %3014 = vmatpush.bf16.msra.mxu0 %v2943
    %3015 = vmatpush.bf16.msra.mxu0 %v2942
    %3016 = vmatpush.bf16.msra.mxu0 %v2941
    %3017 = vmatpush.bf16.msra.mxu0 %v2940
    %3018 = vmatpush.bf16.msra.mxu0 %v2939
    %3019 = vmatpush.bf16.msra.mxu0 %v2938
    %3020 = vmatpush.bf16.msra.mxu0 %v2937
    %3021 = vmatmul.bf16.gmra.mxu0 %v2723
    %v3022 = vpop.f32.mrf.mxu0
    %v3023 = vadd.f32 %v3009, %v3022
    %v3024 = vpop.f32.mrf.mxu0
    %v3025 = vadd.f32 %v3011, %v3024
    %3026 = vdwg.mxu0
    %3027 = vmatpush.bf16.msra.mxu0 %v2952
    %3028 = vmatpush.bf16.msra.mxu0 %v2951
    %3029 = vmatpush.bf16.msra.mxu0 %v2950
    %3030 = vmatpush.bf16.msra.mxu0 %v2949
    %3031 = vmatpush.bf16.msra.mxu0 %v2948
    %3032 = vmatpush.bf16.msra.mxu0 %v2947
    %3033 = vmatpush.bf16.msra.mxu0 %v2946
    %3034 = vmatpush.bf16.msra.mxu0 %v2945
    %3035 = vmatmul.bf16.gmra.mxu0 %v2724
    %v3036 = vpop.f32.mrf.mxu0
    %v3037 = vadd.f32 %v3023, %v3036
    %v3038 = vpop.f32.mrf.mxu0
    %v3039 = vadd.f32 %v3025, %v3038
    %3040 = vdwg.mxu0
    %v3041 = vmax.f32 %v3037, 0.0
    %v3042 = vmax.f32 %v3039, 0.0
    %v3043 = vpack.c.bf16 %v3041, %v3041
    %v3044 = vpack.c.bf16 %v3042, %v3042
    %v3047 = vrot.slane %v3043, 3
    %v3048 = vrot.slane %v3044, 3
    %vm3049 = vcmask 1040384
    %v3052 = vsel %vm3049, %v3043, %v3047
    %vm3053 = vcmask 1041409
    %v3054 = vsel %vm3053, %v3043, %v3047
    %v3056 = vrot.slane %v3054, 1
    %vm3057 = vcmask 1042434
    %v3058 = vsel %vm3057, %v3043, %v3047
    %v3060 = vrot.slane %v3058, 2
    %vm3061 = vcmask 1043459
    %v3062 = vsel %vm3061, %v3043, %v3047
    %v3064 = vrot.slane %v3062, 3
    %v3067 = vsel %vm3049, %v3044, %v3048
    %v3068 = vsel %vm3053, %v3044, %v3048
    %v3070 = vrot.slane %v3068, 1
    %v3071 = vsel %vm3057, %v3044, %v3048
    %v3073 = vrot.slane %v3071, 2
    %v3074 = vsel %vm3061, %v3044, %v3048
    %v3076 = vrot.slane %v3074, 3
    %3085 = vst [vmem:[#allocation2] sm:$0x1] %v3052
    %3086 = vst [vmem:[#allocation2 + $0x1] sm:$0x1] %v3056
    %3087 = vst [vmem:[#allocation2 + $0x2] sm:$0x1] %v3060
    %3088 = vst [vmem:[#allocation2 + $0x3] sm:$0x1] %v3064
    %3089 = vst [vmem:[#allocation2 + $0x4] sm:$0x1] %v3067
    %3090 = vst [vmem:[#allocation2 + $0x5] sm:$0x1] %v3070
    %3091 = vst [vmem:[#allocation2 + $0x6] sm:$0x1] %v3073
    %3092 = vst [vmem:[#allocation2 + $0x7] sm:$0x1] %v3076
    // Predicated region
    $region30: #{neural_network_forward.1} parent=1 // pred_check
      _
    $region31: #{neural_network_forward.1} parent=1 // pred_check_branch
      %3094 = sbr.rel (0) target = $region33
    $region32: #{neural_network_forward.1} parent=1 // pred_region
      // Predicated region
      $region34: #{neural_network_forward.1} parent=32 // pred_check
        _
      $region35: #{neural_network_forward.1} parent=32 // pred_check_branch
        %3096 = sbr.rel (0) target = $region37
      $region36: #{neural_network_forward.1} parent=32 // pred_region
        // Predicated region
        $region38: #{neural_network_forward.1} parent=36 // pred_check
          _
        $region39: #{neural_network_forward.1} parent=36 // pred_check_branch
          %3098 = sbr.rel target = $region41
        $region40: #{neural_network_forward.1} parent=36 // pred_region
          // Predicated region
          $region53: #{neural_network_forward.1} parent=40 // pred_check
            _
          $region54: #{neural_network_forward.1} parent=40 // pred_check_branch
            %3114 = sbr.rel (0) target = $region56
          $region55: #{neural_network_forward.1} parent=40 // pred_region
            %s3116 = ssub.s32 2, 1
            loop: start=0, step=1, limit=1
            $region57: #{neural_network_forward.1} parent=55 // loop_pre_header
              _
            $region58: #{neural_network_forward.1} parent=55 // loop_header
              %s3118 = sphi 0, %s3122
              %p3119 = scmp.ge.s32.totalorder %s3118, 1
              %s3123 = sphi [#allocation2], [#allocation2]
              %s3124 = sphi %s7, %s7
            $region59: #{neural_network_forward.1} parent=55 // loop_header_branch
              %3121 = sbr.rel (%p3119) target = $region63
            $region60: #{neural_network_forward.1} parent=55 // loop_body
              %v3125 = vld [vmem:[%s3123] sm:%s3116]
              %3126 = vst [vmem:[%s3124] sm:%s3116] %v3125
            $region61: #{neural_network_forward.1} parent=55 // loop_footer
              %s3122 = sadd.s32 1, %s3118
            $region62: #{neural_network_forward.1} parent=55 // loop_footer_branch
              %3117 = sbr.rel target = $region58
            $region63: #{neural_network_forward.1} parent=55 // loop_exit
              _
          $region56: #{neural_network_forward.1} parent=40 // pred_fallthru
            _
        $region41: #{neural_network_forward.1} parent=36 // pred_fallthru
          _
        // Predicated region
        $region42: #{neural_network_forward.1} parent=36 // pred_check
          _
        $region43: #{neural_network_forward.1} parent=36 // pred_check_branch
          %3100 = sbr.rel (0) target = $region45
        $region44: #{neural_network_forward.1} parent=36 // pred_region
          %s3102 = ssub.s32 2, 1
          loop: start=0, step=1, limit=1
          $region46: #{neural_network_forward.1} parent=44 // loop_pre_header
            _
          $region47: #{neural_network_forward.1} parent=44 // loop_header
            %s3104 = sphi 0, %s3108
            %p3105 = scmp.ge.s32.totalorder %s3104, 1
            %s3109 = sphi [#allocation2], [#allocation2]
            %s3110 = sphi %s7, %s7
          $region48: #{neural_network_forward.1} parent=44 // loop_header_branch
            %3107 = sbr.rel (%p3105) target = $region52
          $region49: #{neural_network_forward.1} parent=44 // loop_body
            %v3111 = vld [vmem:[%s3109] sm:%s3102]
            %3112 = vst [vmem:[%s3110] sm:%s3102] %v3111
          $region50: #{neural_network_forward.1} parent=44 // loop_footer
            %s3108 = sadd.s32 1, %s3104
          $region51: #{neural_network_forward.1} parent=44 // loop_footer_branch
            %3103 = sbr.rel target = $region47
          $region52: #{neural_network_forward.1} parent=44 // loop_exit
            _
        $region45: #{neural_network_forward.1} parent=36 // pred_fallthru
          _
      $region37: #{neural_network_forward.1} parent=32 // pred_fallthru
        _
      %3127 = vnop
    $region33: #{neural_network_forward.1} parent=1 // pred_fallthru
      _
    // Predicated region
    $region64: #{neural_network_forward.1} parent=1 // pred_check
      _
    $region65: #{neural_network_forward.1} parent=1 // pred_check_branch
      %3129 = sbr.rel (0) target = $region67
    $region66: #{neural_network_forward.1} parent=1 // pred_region
      _
    $region67: #{neural_network_forward.1} parent=1 // pred_fallthru
      _

</llo_original>
